<compile_context>
chip_gen: v7x
topology: tpu7x:2x2x1
jax: 0.10.0
libtpu: 0.0.40
codegen_flags: <defaults>
</compile_context>

<pallas_src>
import collections
import functools

import numpy as np

import jax
import jax.numpy as jnp
from jax.experimental import pallas as pl
from jax.experimental.pallas import tpu as pltpu


MATMUL_DTYPE = jnp.bfloat16   # MXU operand dtype (f32 accumulation everywhere)
MXU_WIDTH = 256               # v6e/v7x MXU N; on v5e this only widens group clusters


def _vmem_limit_bytes():
    """Scoped VMEM limit derived from the actual chip (v7x: 64 MiB, v5e/v6e: 128)."""
    cap = 128 * 1024 * 1024
    try:
        info = pltpu.get_tpu_info()
        cap = int(getattr(info, "vmem_capacity_bytes", cap))
    except Exception:
        pass
    # leave ~3/8 of physical VMEM for compiler scratch / pipeline overhead
    return int(min(cap * 5 // 8, 100 * 1024 * 1024))


BlockCfg = collections.namedtuple(
    "BlockCfg", ["stride", "groups", "nc", "cw", "w_b", "w_out", "use_se", "use_proj"])


# ----------------------------------------------------------------------------- #
# The fused kernel (one grid step == one image)
# ----------------------------------------------------------------------------- #
def _block_kernel(*refs, taps, res_src, nc, cw, m_rows, inv_hw, use_se, use_proj):
    """conv-a(1x1)+BN+ReLU -> grouped 3x3+BN+ReLU -> [SE] -> 1x1 conv-c+BN
       -> (+ projected residual) -> ReLU, all on one resident image tile."""
    it = list(refs)
    x_par, bmask = it[0], it[1]
    idx = 2
    if use_se:
        cmask = it[idx]; idx += 1
    wa, ba, wb, bb = it[idx:idx + 4]; idx += 4
    if use_se:
        w1, b1, w2, b2 = it[idx:idx + 4]; idx += 4
    wc, bc = it[idx:idx + 2]; idx += 2
    if use_proj:
        wp, bp = it[idx:idx + 2]; idx += 2
    o_ref = it[idx]

    n_par = x_par.shape[1]

    # conv-a (1x1, BN scale folded into wa) + ReLU on every parity plane of the
    # zero-padded input.  bmask zeroes the rows that correspond to the 3x3's
    # zero padding of `a` (so padding semantics match the reference exactly).
    a_par = []
    for p in range(n_par):
        av = jnp.dot(x_par[0, p], wa[...], preferred_element_type=jnp.float32)
        av = jnp.maximum(av + ba[...], 0.0) * bmask[p]
        a_par.append(av.astype(MATMUL_DTYPE))

    # grouped 3x3 conv (stride already folded into the parity decomposition):
    # 9 tap GEMMs per group-cluster; the weight is block-diagonal only inside a
    # cluster, so MXU waste is bounded by one MXU pass instead of G x.
    parts = []
    for c in range(nc):
        c0 = c * cw
        acc = jnp.zeros((m_rows, cw), jnp.float32)
        for t, (pidx, off) in enumerate(taps):
            a_sl = a_par[pidx][off:off + m_rows, c0:c0 + cw]
            w_sl = wb[c, t * cw:(t + 1) * cw, :]
            acc = acc + jnp.dot(a_sl, w_sl, preferred_element_type=jnp.float32)
        parts.append(acc + bb[:, c0:c0 + cw])
    b = parts[0] if nc == 1 else jnp.concatenate(parts, axis=-1)
    b = jnp.maximum(b, 0.0)                                   # (m_rows, w_b) f32

    # Squeeze-and-Excitation, fused (pool over the valid columns only).
    if use_se:
        pooled = jnp.sum(b * cmask[...], axis=0, keepdims=True) * inv_hw
        h = jnp.dot(pooled.astype(MATMUL_DTYPE), w1[...],
                    preferred_element_type=jnp.float32) + b1[...]
        h = jnp.maximum(h, 0.0)
        g = jnp.dot(h.astype(MATMUL_DTYPE), w2[...],
                    preferred_element_type=jnp.float32) + b2[...]
        b = b * jax.nn.sigmoid(g)

    # 1x1 conv-c (BN scale folded) + bias.
    y = jnp.dot(b.astype(MATMUL_DTYPE), wc[...],
                preferred_element_type=jnp.float32) + bc[...]

    # Residual path, fused: either the projected (1x1, stride) input or the input
    # itself; the strided sample of x is just another tap-slice of the parity data.
    rp, roff = res_src
    r_sl = x_par[0, rp, roff:roff + m_rows, :]
    if use_proj:
        res = jnp.dot(r_sl, wp[...], preferred_element_type=jnp.float32) + bp[...]
    else:
        res = r_sl.astype(jnp.float32)

    o_ref[0] = jnp.maximum(y + res, 0.0).astype(o_ref.dtype)


def _const_spec(shape):
    return pl.BlockSpec(tuple(shape), lambda n, _r=len(shape): (0,) * _r)


# ----------------------------------------------------------------------------- #
# Forward wrapper
# ----------------------------------------------------------------------------- #
def res_bottleneck_block_pallas(x_nchw, prep, *, cfg):
    N, Cin, H, W = x_nchw.shape
    s = cfg.stride
    Ho = (H - 1) // s + 1
    Wo = (W - 1) // s + 1
    dh = 2 // s                       # max tap offset in parity space
    Hq = Ho + dh + 1                  # one spare row so all tap slices stay in-bounds
    Wq = Wo + dh
    P = s * s
    L = Hq * Wq
    M = Ho * Wq                       # in-kernel spatial rows (Wq-Wo garbage cols/row)

    # NHWC, zero-pad, parity-decompose (stride folded), flatten spatial -> 2-D rows.
    x = jnp.transpose(x_nchw, (0, 2, 3, 1))
    xp = jnp.pad(x, ((0, 0), (1, s * Hq - H - 1), (1, s * Wq - W - 1), (0, 0)))
    x_par = (xp.reshape(N, Hq, s, Wq, s, Cin)
               .transpose(0, 2, 4, 1, 3, 5)
               .reshape(N, P, L, Cin)).astype(MATMUL_DTYPE)

    # Static masks (numpy -> compile-time constants).
    cm = np.zeros((s * Hq, s * Wq), np.float32)
    cm[1:H + 1, 1:W + 1] = 1.0
    bmask = jnp.asarray(
        cm.reshape(Hq, s, Wq, s).transpose(1, 3, 0, 2).reshape(P, L, 1))

    taps = tuple(((kh % s) * s + (kw % s), (kh // s) * Wq + (kw // s))
                 for kh in range(3) for kw in range(3))
    res_src = ((1 % s) * s + (1 % s), (1 // s) * Wq + (1 // s))

    inputs = [x_par, bmask]
    in_specs = [pl.BlockSpec((1, P, L, Cin), lambda n: (n, 0, 0, 0)),
                _const_spec(bmask.shape)]
    if cfg.use_se:
        colmask = jnp.asarray(
            ((np.arange(M) % Wq) < Wo).astype(np.float32).reshape(M, 1))
        inputs.append(colmask)
        in_specs.append(_const_spec(colmask.shape))

    shared = [prep["wa"], prep["ba"], prep["wb"], prep["bb"]]
    if cfg.use_se:
        shared += [prep["w1"], prep["b1"], prep["w2"], prep["b2"]]
    shared += [prep["wc"], prep["bc"]]
    if cfg.use_proj:
        shared += [prep["wp"], prep["bp"]]
    for arr in shared:
        inputs.append(arr)
        in_specs.append(_const_spec(arr.shape))

    kern = functools.partial(
        _block_kernel, taps=taps, res_src=res_src, nc=cfg.nc, cw=cfg.cw,
        m_rows=M, inv_hw=1.0 / float(Ho * Wo),
        use_se=cfg.use_se, use_proj=cfg.use_proj)

    out = pl.pallas_call(
        kern,
        out_shape=jax.ShapeDtypeStruct((N, M, cfg.w_out), jnp.float32),
        grid=(N,),
        in_specs=in_specs,
        out_specs=pl.BlockSpec((1, M, cfg.w_out), lambda n: (n, 0, 0)),
        compiler_params=pltpu.CompilerParams(
            dimension_semantics=("parallel",),
            vmem_limit_bytes=_vmem_limit_bytes()),
    )(*inputs)

    out = out.reshape(N, Ho, Wq, cfg.w_out)[:, :, :Wo, :]
    return jnp.transpose(out, (0, 3, 1, 2))                   # NCHW


# ----------------------------------------------------------------------------- #
# One-time parameter preparation (BN folding + weight layout), hoisted out of jit
# ----------------------------------------------------------------------------- #
def fold_bn(p, eps=1e-5):
    gamma, beta, mean, var = p
    scale = gamma / jnp.sqrt(var + eps)
    return scale, beta - mean * scale


def prepare_block(params, *, stride, groups, use_se, eps=1e-5):
    w_b = params["wa"].shape[0]
    w_out = params["wc"].shape[0]
    cg = w_b // groups

    sa, ba = fold_bn(params["a_bn"], eps)
    wa = (params["wa"][:, :, 0, 0].T * sa[None, :]).astype(MATMUL_DTYPE)

    sb, bb = fold_bn(params["b_bn"], eps)
    wt = jnp.transpose(params["wb"], (2, 3, 1, 0))                  # (3,3,cg,w_b)
    wt_full = wt[:, :, jnp.arange(w_b) % cg, :]                     # (3,3,w_b,w_b)
    gmask = (jnp.arange(w_b)[:, None] // cg) == (jnp.arange(w_b)[None, :] // cg)
    w_dense = jnp.where(gmask[None, None], wt_full, 0.0) * sb[None, None, None, :]

    # Group-cluster tiling: pack enough groups to fill one MXU pass per cluster;
    # keep the fully dense block-diag only while w_b is already small.
    if w_b <= 2 * MXU_WIDTH:
        gpc = groups
    else:
        gpc = max(1, min(groups, MXU_WIDTH // max(cg, 1)))
        while groups % gpc:
            gpc -= 1
    nc = groups // gpc
    cw = gpc * cg
    wd = w_dense.reshape(3, 3, nc, cw, nc, cw)
    blocks = wd[:, :, jnp.arange(nc), :, jnp.arange(nc), :]         # (nc,3,3,cw,cw)
    wb_cl = blocks.reshape(nc, 9 * cw, cw).astype(MATMUL_DTYPE)

    sc, bc = fold_bn(params["c_bn"], eps)
    wc = (params["wc"][:, :, 0, 0].T * sc[None, :]).astype(MATMUL_DTYPE)

    prep = {"wa": wa, "ba": ba.reshape(1, w_b).astype(jnp.float32),
            "wb": wb_cl, "bb": bb.reshape(1, w_b).astype(jnp.float32),
            "wc": wc, "bc": bc.reshape(1, w_out).astype(jnp.float32)}
    if use_se:
        prep["w1"] = params["w_se1"][:, :, 0, 0].T.astype(MATMUL_DTYPE)
        prep["b1"] = params["b_se1"].reshape(1, -1).astype(jnp.float32)
        prep["w2"] = params["w_se2"][:, :, 0, 0].T.astype(MATMUL_DTYPE)
        prep["b2"] = params["b_se2"].reshape(1, -1).astype(jnp.float32)
    use_proj = "wproj" in params
    if use_proj:
        sp, bp = fold_bn(params["p_bn"], eps)
        prep["wp"] = (params["wproj"][:, :, 0, 0].T * sp[None, :]).astype(MATMUL_DTYPE)
        prep["bp"] = bp.reshape(1, w_out).astype(jnp.float32)

    return prep, BlockCfg(stride, groups, nc, cw, w_b, w_out, use_se, use_proj)


# ----------------------------------------------------------------------------- #
# Parameter init (mirrors the PyTorch module) + pure-JAX reference
# ----------------------------------------------------------------------------- #
def init_params(key, w_in, w_out, stride, bm, gw, se_r):
    w_b = int(round(w_out * bm))
    g = w_b // gw
    keys = jax.random.split(key, 12)

    def conv_w(k, shape):
        return jax.random.normal(k, shape, jnp.float32) * 0.1

    def bn_p(k, c):
        k1, k2, k3, k4 = jax.random.split(k, 4)
        return (jax.random.uniform(k1, (c,), jnp.float32, 0.5, 1.5),
                jax.random.normal(k2, (c,), jnp.float32) * 0.1,
                jax.random.normal(k3, (c,), jnp.float32) * 0.1,
                jax.random.uniform(k4, (c,), jnp.float32, 0.5, 1.5))

    params = {
        "wa": conv_w(keys[0], (w_b, w_in, 1, 1)),
        "a_bn": bn_p(keys[1], w_b),
        "wb": conv_w(keys[2], (w_b, w_b // g, 3, 3)),
        "b_bn": bn_p(keys[3], w_b),
        "wc": conv_w(keys[4], (w_out, w_b, 1, 1)),
        "c_bn": bn_p(keys[5], w_out),
    }
    if se_r:
        w_se = int(round(w_in * se_r))
        params["w_se1"] = conv_w(keys[6], (w_se, w_b, 1, 1))
        params["b_se1"] = jax.random.normal(keys[7], (w_se,), jnp.float32) * 0.1
        params["w_se2"] = conv_w(keys[8], (w_b, w_se, 1, 1))
        params["b_se2"] = jax.random.normal(keys[9], (w_b,), jnp.float32) * 0.1
    if w_in != w_out or stride != 1:
        params["wproj"] = conv_w(keys[10], (w_out, w_in, 1, 1))
        params["p_bn"] = bn_p(keys[11], w_out)
    return params, g


def _conv_nchw(x, w, stride=1, padding=0, groups=1, bias=None):
    out = jax.lax.conv_general_dilated(
        x, w, (stride, stride), [(padding, padding)] * 2,
        dimension_numbers=("NCHW", "OIHW", "NCHW"), feature_group_count=groups)
    if bias is not None:
        out = out + bias[None, :, None, None]
    return out


def ref_forward(x, params, stride, groups, use_se, eps=1e-5):
    def bn(t, p):
        g, b, m, v = p
        return ((t - m[None, :, None, None]) / jnp.sqrt(v[None, :, None, None] + eps)
                * g[None, :, None, None] + b[None, :, None, None])

    a = jax.nn.relu(bn(_conv_nchw(x, params["wa"]), params["a_bn"]))
    b = jax.nn.relu(bn(_conv_nchw(a, params["wb"], stride=stride, padding=1,
                                  groups=groups), params["b_bn"]))
    if use_se:
        s = jnp.mean(b, axis=(2, 3), keepdims=True)
        s = jax.nn.relu(_conv_nchw(s, params["w_se1"], bias=params["b_se1"]))
        s = jax.nn.sigmoid(_conv_nchw(s, params["w_se2"], bias=params["b_se2"]))
        b = b * s
    c = bn(_conv_nchw(b, params["wc"]), params["c_bn"])
    if "wproj" in params:
        r = bn(_conv_nchw(x, params["wproj"], stride=stride), params["p_bn"])
    else:
        r = x
    return jax.nn.relu(r + c)


# ----------------------------------------------------------------------------- #
def _run_case(key, *, N, w_in, H, W, w_out, stride, bm, gw, se_r, tol=5e-2):
    kx, kp = jax.random.split(key)
    x = jax.random.normal(kx, (N, w_in, H, W), jnp.float32)
    params, groups = init_params(kp, w_in, w_out, stride, bm, gw, se_r)
    use_se = bool(se_r)

    prep, cfg = prepare_block(params, stride=stride, groups=groups, use_se=use_se)
    fwd = jax.jit(functools.partial(res_bottleneck_block_pallas, cfg=cfg))
    out = jax.block_until_ready(fwd(x, prep))

    ref = ref_forward(x, params, stride, groups, use_se)
    assert out.shape == ref.shape, (out.shape, ref.shape)
    err = float(jnp.max(jnp.abs(out - ref)))
    assert err < tol, f"max abs err {err}"
    return err


if __name__ == "__main__":
    key = jax.random.PRNGKey(0)
    k1, k2 = jax.random.split(key)

    # ResBottleneckBlock(w_in=8, w_out=16, stride=2, bm=1.0, gw=4, se_r=0.25)
    _run_case(k1, N=2, w_in=8, H=8, W=8, w_out=16, stride=2, bm=1.0, gw=4, se_r=0.25)

    # Projection-free / SE-free variant: ResBottleneckBlock(16, 16, 1, 1.0, 8, None)
    _run_case(k2, N=2, w_in=16, H=8, W=8, w_out=16, stride=1, bm=1.0, gw=8, se_r=None)

    print("KERNEL_OK")
</pallas_src>

<mosaic_0001>
module attributes {stable_mosaic.version = 11 : i64} {
  func.func @_block_kernel(%arg0: i32, %arg1: memref<1x4x30x8xbf16, #tpu.memory_space<vmem>>, %arg2: memref<4x30x1xf32, #tpu.memory_space<vmem>>, %arg3: memref<20x1xf32, #tpu.memory_space<vmem>>, %arg4: memref<8x16xbf16, #tpu.memory_space<vmem>>, %arg5: memref<1x16xf32, #tpu.memory_space<vmem>>, %arg6: memref<1x144x16xbf16, #tpu.memory_space<vmem>>, %arg7: memref<1x16xf32, #tpu.memory_space<vmem>>, %arg8: memref<16x2xbf16, #tpu.memory_space<vmem>>, %arg9: memref<1x2xf32, #tpu.memory_space<vmem>>, %arg10: memref<2x16xbf16, #tpu.memory_space<vmem>>, %arg11: memref<1x16xf32, #tpu.memory_space<vmem>>, %arg12: memref<16x16xbf16, #tpu.memory_space<vmem>>, %arg13: memref<1x16xf32, #tpu.memory_space<vmem>>, %arg14: memref<8x16xbf16, #tpu.memory_space<vmem>>, %arg15: memref<1x16xf32, #tpu.memory_space<vmem>>, %arg16: memref<1x20x16xf32, #tpu.memory_space<vmem>>) attributes {dimension_semantics = [#tpu.dimension_semantics<parallel>], iteration_bounds = array<i64: 2>, scalar_prefetch = 0 : i64, scratch_operands = 0 : i64, tpu.core_type = #tpu.core_type<tc>, window_params = [{transform_indices = @transform_0, window_bounds = array<i64: 1, 4, 30, 8>}, {pipeline_mode = #tpu.pipeline_mode<synchronous>, transform_indices = @transform_1, window_bounds = array<i64: 4, 30, 1>}, {pipeline_mode = #tpu.pipeline_mode<synchronous>, transform_indices = @transform_2, window_bounds = array<i64: 20, 1>}, {pipeline_mode = #tpu.pipeline_mode<synchronous>, transform_indices = @transform_3, window_bounds = array<i64: 8, 16>}, {pipeline_mode = #tpu.pipeline_mode<synchronous>, transform_indices = @transform_4, window_bounds = array<i64: 1, 16>}, {pipeline_mode = #tpu.pipeline_mode<synchronous>, transform_indices = @transform_5, window_bounds = array<i64: 1, 144, 16>}, {pipeline_mode = #tpu.pipeline_mode<synchronous>, transform_indices = @transform_6, window_bounds = array<i64: 1, 16>}, {pipeline_mode = #tpu.pipeline_mode<synchronous>, transform_indices = @transform_7, window_bounds = array<i64: 16, 2>}, {pipeline_mode = #tpu.pipeline_mode<synchronous>, transform_indices = @transform_8, window_bounds = array<i64: 1, 2>}, {pipeline_mode = #tpu.pipeline_mode<synchronous>, transform_indices = @transform_9, window_bounds = array<i64: 2, 16>}, {pipeline_mode = #tpu.pipeline_mode<synchronous>, transform_indices = @transform_10, window_bounds = array<i64: 1, 16>}, {pipeline_mode = #tpu.pipeline_mode<synchronous>, transform_indices = @transform_11, window_bounds = array<i64: 16, 16>}, {pipeline_mode = #tpu.pipeline_mode<synchronous>, transform_indices = @transform_12, window_bounds = array<i64: 1, 16>}, {pipeline_mode = #tpu.pipeline_mode<synchronous>, transform_indices = @transform_13, window_bounds = array<i64: 8, 16>}, {pipeline_mode = #tpu.pipeline_mode<synchronous>, transform_indices = @transform_14, window_bounds = array<i64: 1, 16>}, {transform_indices = @transform_15, window_bounds = array<i64: 1, 20, 16>}]} {
    %c0 = arith.constant 0 : index
    %c0_0 = arith.constant 0 : index
    %c0_1 = arith.constant 0 : index
    %c0_2 = arith.constant 0 : index
    %0 = vector.load %arg1[%c0, %c0_0, %c0_1, %c0_2] : memref<1x4x30x8xbf16, #tpu.memory_space<vmem>>, vector<1x1x30x8xbf16>
    %1 = vector.shape_cast %0 : vector<1x1x30x8xbf16> to vector<30x8xbf16>
    %c0_3 = arith.constant 0 : index
    %c0_4 = arith.constant 0 : index
    %2 = vector.load %arg4[%c0_3, %c0_4] : memref<8x16xbf16, #tpu.memory_space<vmem>>, vector<8x16xbf16>
    %cst = arith.constant dense<0.000000e+00> : vector<30x16xf32>
    %3 = tpu.matmul %1, %2, %cst {dimension_numbers = #tpu.dot_dimension_numbers<[1], [0], [0], [1], [0, 0, 1, 1], [], []>} : vector<30x8xbf16>, vector<8x16xbf16>, vector<30x16xf32> -> vector<30x16xf32>
    %c0_5 = arith.constant 0 : index
    %c0_6 = arith.constant 0 : index
    %4 = vector.load %arg5[%c0_5, %c0_6] : memref<1x16xf32, #tpu.memory_space<vmem>>, vector<1x16xf32>
    %5 = vector.broadcast %4 : vector<1x16xf32> to vector<30x16xf32>
    %6 = arith.addf %3, %5 : vector<30x16xf32>
    %cst_7 = arith.constant 0.000000e+00 : f32
    %7 = vector.broadcast %cst_7 : f32 to vector<30x16xf32>
    %8 = arith.maximumf %6, %7 : vector<30x16xf32>
    %c0_8 = arith.constant 0 : index
    %c0_9 = arith.constant 0 : index
    %c0_10 = arith.constant 0 : index
    %9 = vector.load %arg2[%c0_8, %c0_9, %c0_10] : memref<4x30x1xf32, #tpu.memory_space<vmem>>, vector<1x30x1xf32>
    %10 = vector.shape_cast %9 : vector<1x30x1xf32> to vector<30x1xf32>
    %11 = vector.broadcast %10 : vector<30x1xf32> to vector<30x16xf32>
    %12 = arith.mulf %8, %11 : vector<30x16xf32>
    %13 = arith.truncf %12 : vector<30x16xf32> to vector<30x16xbf16>
    %c0_11 = arith.constant 0 : index
    %c1 = arith.constant 1 : index
    %c0_12 = arith.constant 0 : index
    %c0_13 = arith.constant 0 : index
    %14 = vector.load %arg1[%c0_11, %c1, %c0_12, %c0_13] : memref<1x4x30x8xbf16, #tpu.memory_space<vmem>>, vector<1x1x30x8xbf16>
    %15 = vector.shape_cast %14 : vector<1x1x30x8xbf16> to vector<30x8xbf16>
    %c0_14 = arith.constant 0 : index
    %c0_15 = arith.constant 0 : index
    %16 = vector.load %arg4[%c0_14, %c0_15] : memref<8x16xbf16, #tpu.memory_space<vmem>>, vector<8x16xbf16>
    %cst_16 = arith.constant dense<0.000000e+00> : vector<30x16xf32>
    %17 = tpu.matmul %15, %16, %cst_16 {dimension_numbers = #tpu.dot_dimension_numbers<[1], [0], [0], [1], [0, 0, 1, 1], [], []>} : vector<30x8xbf16>, vector<8x16xbf16>, vector<30x16xf32> -> vector<30x16xf32>
    %c0_17 = arith.constant 0 : index
    %c0_18 = arith.constant 0 : index
    %18 = vector.load %arg5[%c0_17, %c0_18] : memref<1x16xf32, #tpu.memory_space<vmem>>, vector<1x16xf32>
    %19 = vector.broadcast %18 : vector<1x16xf32> to vector<30x16xf32>
    %20 = arith.addf %17, %19 : vector<30x16xf32>
    %cst_19 = arith.constant 0.000000e+00 : f32
    %21 = vector.broadcast %cst_19 : f32 to vector<30x16xf32>
    %22 = arith.maximumf %20, %21 : vector<30x16xf32>
    %c1_20 = arith.constant 1 : index
    %c0_21 = arith.constant 0 : index
    %c0_22 = arith.constant 0 : index
    %23 = vector.load %arg2[%c1_20, %c0_21, %c0_22] : memref<4x30x1xf32, #tpu.memory_space<vmem>>, vector<1x30x1xf32>
    %24 = vector.shape_cast %23 : vector<1x30x1xf32> to vector<30x1xf32>
    %25 = vector.broadcast %24 : vector<30x1xf32> to vector<30x16xf32>
    %26 = arith.mulf %22, %25 : vector<30x16xf32>
    %27 = arith.truncf %26 : vector<30x16xf32> to vector<30x16xbf16>
    %c0_23 = arith.constant 0 : index
    %c2 = arith.constant 2 : index
    %c0_24 = arith.constant 0 : index
    %c0_25 = arith.constant 0 : index
    %28 = vector.load %arg1[%c0_23, %c2, %c0_24, %c0_25] : memref<1x4x30x8xbf16, #tpu.memory_space<vmem>>, vector<1x1x30x8xbf16>
    %29 = vector.shape_cast %28 : vector<1x1x30x8xbf16> to vector<30x8xbf16>
    %c0_26 = arith.constant 0 : index
    %c0_27 = arith.constant 0 : index
    %30 = vector.load %arg4[%c0_26, %c0_27] : memref<8x16xbf16, #tpu.memory_space<vmem>>, vector<8x16xbf16>
    %cst_28 = arith.constant dense<0.000000e+00> : vector<30x16xf32>
    %31 = tpu.matmul %29, %30, %cst_28 {dimension_numbers = #tpu.dot_dimension_numbers<[1], [0], [0], [1], [0, 0, 1, 1], [], []>} : vector<30x8xbf16>, vector<8x16xbf16>, vector<30x16xf32> -> vector<30x16xf32>
    %c0_29 = arith.constant 0 : index
    %c0_30 = arith.constant 0 : index
    %32 = vector.load %arg5[%c0_29, %c0_30] : memref<1x16xf32, #tpu.memory_space<vmem>>, vector<1x16xf32>
    %33 = vector.broadcast %32 : vector<1x16xf32> to vector<30x16xf32>
    %34 = arith.addf %31, %33 : vector<30x16xf32>
    %cst_31 = arith.constant 0.000000e+00 : f32
    %35 = vector.broadcast %cst_31 : f32 to vector<30x16xf32>
    %36 = arith.maximumf %34, %35 : vector<30x16xf32>
    %c2_32 = arith.constant 2 : index
    %c0_33 = arith.constant 0 : index
    %c0_34 = arith.constant 0 : index
    %37 = vector.load %arg2[%c2_32, %c0_33, %c0_34] : memref<4x30x1xf32, #tpu.memory_space<vmem>>, vector<1x30x1xf32>
    %38 = vector.shape_cast %37 : vector<1x30x1xf32> to vector<30x1xf32>
    %39 = vector.broadcast %38 : vector<30x1xf32> to vector<30x16xf32>
    %40 = arith.mulf %36, %39 : vector<30x16xf32>
    %41 = arith.truncf %40 : vector<30x16xf32> to vector<30x16xbf16>
    %c0_35 = arith.constant 0 : index
    %c3 = arith.constant 3 : index
    %c0_36 = arith.constant 0 : index
    %c0_37 = arith.constant 0 : index
    %42 = vector.load %arg1[%c0_35, %c3, %c0_36, %c0_37] : memref<1x4x30x8xbf16, #tpu.memory_space<vmem>>, vector<1x1x30x8xbf16>
    %43 = vector.shape_cast %42 : vector<1x1x30x8xbf16> to vector<30x8xbf16>
    %c0_38 = arith.constant 0 : index
    %c0_39 = arith.constant 0 : index
    %44 = vector.load %arg4[%c0_38, %c0_39] : memref<8x16xbf16, #tpu.memory_space<vmem>>, vector<8x16xbf16>
    %cst_40 = arith.constant dense<0.000000e+00> : vector<30x16xf32>
    %45 = tpu.matmul %43, %44, %cst_40 {dimension_numbers = #tpu.dot_dimension_numbers<[1], [0], [0], [1], [0, 0, 1, 1], [], []>} : vector<30x8xbf16>, vector<8x16xbf16>, vector<30x16xf32> -> vector<30x16xf32>
    %c0_41 = arith.constant 0 : index
    %c0_42 = arith.constant 0 : index
    %46 = vector.load %arg5[%c0_41, %c0_42] : memref<1x16xf32, #tpu.memory_space<vmem>>, vector<1x16xf32>
    %47 = vector.broadcast %46 : vector<1x16xf32> to vector<30x16xf32>
    %48 = arith.addf %45, %47 : vector<30x16xf32>
    %cst_43 = arith.constant 0.000000e+00 : f32
    %49 = vector.broadcast %cst_43 : f32 to vector<30x16xf32>
    %50 = arith.maximumf %48, %49 : vector<30x16xf32>
    %c3_44 = arith.constant 3 : index
    %c0_45 = arith.constant 0 : index
    %c0_46 = arith.constant 0 : index
    %51 = vector.load %arg2[%c3_44, %c0_45, %c0_46] : memref<4x30x1xf32, #tpu.memory_space<vmem>>, vector<1x30x1xf32>
    %52 = vector.shape_cast %51 : vector<1x30x1xf32> to vector<30x1xf32>
    %53 = vector.broadcast %52 : vector<30x1xf32> to vector<30x16xf32>
    %54 = arith.mulf %50, %53 : vector<30x16xf32>
    %55 = arith.truncf %54 : vector<30x16xf32> to vector<30x16xbf16>
    %cst_47 = arith.constant 0.000000e+00 : f32
    %56 = vector.broadcast %cst_47 : f32 to vector<20x16xf32>
    %57 = vector.extract_strided_slice %13 {offsets = [0, 0], sizes = [20, 16], strides = [1, 1]} : vector<30x16xbf16> to vector<20x16xbf16>
    %c0_48 = arith.constant 0 : index
    %c0_49 = arith.constant 0 : index
    %c0_50 = arith.constant 0 : index
    %58 = vector.load %arg6[%c0_48, %c0_49, %c0_50] : memref<1x144x16xbf16, #tpu.memory_space<vmem>>, vector<1x16x16xbf16>
    %59 = vector.shape_cast %58 : vector<1x16x16xbf16> to vector<16x16xbf16>
    %cst_51 = arith.constant dense<0.000000e+00> : vector<20x16xf32>
    %60 = tpu.matmul %57, %59, %cst_51 {dimension_numbers = #tpu.dot_dimension_numbers<[1], [0], [0], [1], [0, 0, 1, 1], [], []>} : vector<20x16xbf16>, vector<16x16xbf16>, vector<20x16xf32> -> vector<20x16xf32>
    %61 = arith.addf %56, %60 : vector<20x16xf32>
    %62 = vector.extract_strided_slice %27 {offsets = [0, 0], sizes = [20, 16], strides = [1, 1]} : vector<30x16xbf16> to vector<20x16xbf16>
    %c0_52 = arith.constant 0 : index
    %c16 = arith.constant 16 : index
    %c0_53 = arith.constant 0 : index
    %63 = vector.load %arg6[%c0_52, %c16, %c0_53] : memref<1x144x16xbf16, #tpu.memory_space<vmem>>, vector<1x16x16xbf16>
    %64 = vector.shape_cast %63 : vector<1x16x16xbf16> to vector<16x16xbf16>
    %cst_54 = arith.constant dense<0.000000e+00> : vector<20x16xf32>
    %65 = tpu.matmul %62, %64, %cst_54 {dimension_numbers = #tpu.dot_dimension_numbers<[1], [0], [0], [1], [0, 0, 1, 1], [], []>} : vector<20x16xbf16>, vector<16x16xbf16>, vector<20x16xf32> -> vector<20x16xf32>
    %66 = arith.addf %61, %65 : vector<20x16xf32>
    %67 = vector.extract_strided_slice %13 {offsets = [1, 0], sizes = [20, 16], strides = [1, 1]} : vector<30x16xbf16> to vector<20x16xbf16>
    %c0_55 = arith.constant 0 : index
    %c32 = arith.constant 32 : index
    %c0_56 = arith.constant 0 : index
    %68 = vector.load %arg6[%c0_55, %c32, %c0_56] : memref<1x144x16xbf16, #tpu.memory_space<vmem>>, vector<1x16x16xbf16>
    %69 = vector.shape_cast %68 : vector<1x16x16xbf16> to vector<16x16xbf16>
    %cst_57 = arith.constant dense<0.000000e+00> : vector<20x16xf32>
    %70 = tpu.matmul %67, %69, %cst_57 {dimension_numbers = #tpu.dot_dimension_numbers<[1], [0], [0], [1], [0, 0, 1, 1], [], []>} : vector<20x16xbf16>, vector<16x16xbf16>, vector<20x16xf32> -> vector<20x16xf32>
    %71 = arith.addf %66, %70 : vector<20x16xf32>
    %72 = vector.extract_strided_slice %41 {offsets = [0, 0], sizes = [20, 16], strides = [1, 1]} : vector<30x16xbf16> to vector<20x16xbf16>
    %c0_58 = arith.constant 0 : index
    %c48 = arith.constant 48 : index
    %c0_59 = arith.constant 0 : index
    %73 = vector.load %arg6[%c0_58, %c48, %c0_59] : memref<1x144x16xbf16, #tpu.memory_space<vmem>>, vector<1x16x16xbf16>
    %74 = vector.shape_cast %73 : vector<1x16x16xbf16> to vector<16x16xbf16>
    %cst_60 = arith.constant dense<0.000000e+00> : vector<20x16xf32>
    %75 = tpu.matmul %72, %74, %cst_60 {dimension_numbers = #tpu.dot_dimension_numbers<[1], [0], [0], [1], [0, 0, 1, 1], [], []>} : vector<20x16xbf16>, vector<16x16xbf16>, vector<20x16xf32> -> vector<20x16xf32>
    %76 = arith.addf %71, %75 : vector<20x16xf32>
    %77 = vector.extract_strided_slice %55 {offsets = [0, 0], sizes = [20, 16], strides = [1, 1]} : vector<30x16xbf16> to vector<20x16xbf16>
    %c0_61 = arith.constant 0 : index
    %c64 = arith.constant 64 : index
    %c0_62 = arith.constant 0 : index
    %78 = vector.load %arg6[%c0_61, %c64, %c0_62] : memref<1x144x16xbf16, #tpu.memory_space<vmem>>, vector<1x16x16xbf16>
    %79 = vector.shape_cast %78 : vector<1x16x16xbf16> to vector<16x16xbf16>
    %cst_63 = arith.constant dense<0.000000e+00> : vector<20x16xf32>
    %80 = tpu.matmul %77, %79, %cst_63 {dimension_numbers = #tpu.dot_dimension_numbers<[1], [0], [0], [1], [0, 0, 1, 1], [], []>} : vector<20x16xbf16>, vector<16x16xbf16>, vector<20x16xf32> -> vector<20x16xf32>
    %81 = arith.addf %76, %80 : vector<20x16xf32>
    %82 = vector.extract_strided_slice %41 {offsets = [1, 0], sizes = [20, 16], strides = [1, 1]} : vector<30x16xbf16> to vector<20x16xbf16>
    %c0_64 = arith.constant 0 : index
    %c80 = arith.constant 80 : index
    %c0_65 = arith.constant 0 : index
    %83 = vector.load %arg6[%c0_64, %c80, %c0_65] : memref<1x144x16xbf16, #tpu.memory_space<vmem>>, vector<1x16x16xbf16>
    %84 = vector.shape_cast %83 : vector<1x16x16xbf16> to vector<16x16xbf16>
    %cst_66 = arith.constant dense<0.000000e+00> : vector<20x16xf32>
    %85 = tpu.matmul %82, %84, %cst_66 {dimension_numbers = #tpu.dot_dimension_numbers<[1], [0], [0], [1], [0, 0, 1, 1], [], []>} : vector<20x16xbf16>, vector<16x16xbf16>, vector<20x16xf32> -> vector<20x16xf32>
    %86 = arith.addf %81, %85 : vector<20x16xf32>
    %87 = vector.extract_strided_slice %13 {offsets = [5, 0], sizes = [20, 16], strides = [1, 1]} : vector<30x16xbf16> to vector<20x16xbf16>
    %c0_67 = arith.constant 0 : index
    %c96 = arith.constant 96 : index
    %c0_68 = arith.constant 0 : index
    %88 = vector.load %arg6[%c0_67, %c96, %c0_68] : memref<1x144x16xbf16, #tpu.memory_space<vmem>>, vector<1x16x16xbf16>
    %89 = vector.shape_cast %88 : vector<1x16x16xbf16> to vector<16x16xbf16>
    %cst_69 = arith.constant dense<0.000000e+00> : vector<20x16xf32>
    %90 = tpu.matmul %87, %89, %cst_69 {dimension_numbers = #tpu.dot_dimension_numbers<[1], [0], [0], [1], [0, 0, 1, 1], [], []>} : vector<20x16xbf16>, vector<16x16xbf16>, vector<20x16xf32> -> vector<20x16xf32>
    %91 = arith.addf %86, %90 : vector<20x16xf32>
    %92 = vector.extract_strided_slice %27 {offsets = [5, 0], sizes = [20, 16], strides = [1, 1]} : vector<30x16xbf16> to vector<20x16xbf16>
    %c0_70 = arith.constant 0 : index
    %c112 = arith.constant 112 : index
    %c0_71 = arith.constant 0 : index
    %93 = vector.load %arg6[%c0_70, %c112, %c0_71] : memref<1x144x16xbf16, #tpu.memory_space<vmem>>, vector<1x16x16xbf16>
    %94 = vector.shape_cast %93 : vector<1x16x16xbf16> to vector<16x16xbf16>
    %cst_72 = arith.constant dense<0.000000e+00> : vector<20x16xf32>
    %95 = tpu.matmul %92, %94, %cst_72 {dimension_numbers = #tpu.dot_dimension_numbers<[1], [0], [0], [1], [0, 0, 1, 1], [], []>} : vector<20x16xbf16>, vector<16x16xbf16>, vector<20x16xf32> -> vector<20x16xf32>
    %96 = arith.addf %91, %95 : vector<20x16xf32>
    %97 = vector.extract_strided_slice %13 {offsets = [6, 0], sizes = [20, 16], strides = [1, 1]} : vector<30x16xbf16> to vector<20x16xbf16>
    %c0_73 = arith.constant 0 : index
    %c128 = arith.constant 128 : index
    %c0_74 = arith.constant 0 : index
    %98 = vector.load %arg6[%c0_73, %c128, %c0_74] : memref<1x144x16xbf16, #tpu.memory_space<vmem>>, vector<1x16x16xbf16>
    %99 = vector.shape_cast %98 : vector<1x16x16xbf16> to vector<16x16xbf16>
    %cst_75 = arith.constant dense<0.000000e+00> : vector<20x16xf32>
    %100 = tpu.matmul %97, %99, %cst_75 {dimension_numbers = #tpu.dot_dimension_numbers<[1], [0], [0], [1], [0, 0, 1, 1], [], []>} : vector<20x16xbf16>, vector<16x16xbf16>, vector<20x16xf32> -> vector<20x16xf32>
    %101 = arith.addf %96, %100 : vector<20x16xf32>
    %c0_76 = arith.constant 0 : index
    %c0_77 = arith.constant 0 : index
    %102 = vector.load %arg7[%c0_76, %c0_77] : memref<1x16xf32, #tpu.memory_space<vmem>>, vector<1x16xf32>
    %103 = vector.broadcast %102 : vector<1x16xf32> to vector<20x16xf32>
    %104 = arith.addf %101, %103 : vector<20x16xf32>
    %cst_78 = arith.constant 0.000000e+00 : f32
    %105 = vector.broadcast %cst_78 : f32 to vector<20x16xf32>
    %106 = arith.maximumf %104, %105 : vector<20x16xf32>
    %c0_79 = arith.constant 0 : index
    %c0_80 = arith.constant 0 : index
    %107 = vector.load %arg3[%c0_79, %c0_80] : memref<20x1xf32, #tpu.memory_space<vmem>>, vector<20x1xf32>
    %108 = vector.broadcast %107 : vector<20x1xf32> to vector<20x16xf32>
    %109 = arith.mulf %106, %108 : vector<20x16xf32>
    %cst_81 = arith.constant dense<0.000000e+00> : vector<16xf32>
    %110 = vector.multi_reduction <add>, %109, %cst_81 [0] : vector<20x16xf32> to vector<16xf32>
    %111 = vector.shape_cast %110 : vector<16xf32> to vector<1x16xf32>
    %cst_82 = arith.constant 6.250000e-02 : f32
    %112 = vector.broadcast %cst_82 : f32 to vector<1x16xf32>
    %113 = arith.mulf %111, %112 : vector<1x16xf32>
    %114 = arith.truncf %113 : vector<1x16xf32> to vector<1x16xbf16>
    %c0_83 = arith.constant 0 : index
    %c0_84 = arith.constant 0 : index
    %115 = vector.load %arg8[%c0_83, %c0_84] : memref<16x2xbf16, #tpu.memory_space<vmem>>, vector<16x2xbf16>
    %cst_85 = arith.constant dense<0.000000e+00> : vector<1x2xf32>
    %116 = tpu.matmul %114, %115, %cst_85 {dimension_numbers = #tpu.dot_dimension_numbers<[1], [0], [0], [1], [0, 0, 1, 1], [], []>} : vector<1x16xbf16>, vector<16x2xbf16>, vector<1x2xf32> -> vector<1x2xf32>
    %c0_86 = arith.constant 0 : index
    %c0_87 = arith.constant 0 : index
    %117 = vector.load %arg9[%c0_86, %c0_87] : memref<1x2xf32, #tpu.memory_space<vmem>>, vector<1x2xf32>
    %118 = arith.addf %116, %117 : vector<1x2xf32>
    %cst_88 = arith.constant 0.000000e+00 : f32
    %119 = vector.broadcast %cst_88 : f32 to vector<1x2xf32>
    %120 = arith.maximumf %118, %119 : vector<1x2xf32>
    %121 = arith.truncf %120 : vector<1x2xf32> to vector<1x2xbf16>
    %c0_89 = arith.constant 0 : index
    %c0_90 = arith.constant 0 : index
    %122 = vector.load %arg10[%c0_89, %c0_90] : memref<2x16xbf16, #tpu.memory_space<vmem>>, vector<2x16xbf16>
    %cst_91 = arith.constant dense<0.000000e+00> : vector<1x16xf32>
    %123 = tpu.matmul %121, %122, %cst_91 {dimension_numbers = #tpu.dot_dimension_numbers<[1], [0], [0], [1], [0, 0, 1, 1], [], []>} : vector<1x2xbf16>, vector<2x16xbf16>, vector<1x16xf32> -> vector<1x16xf32>
    %c0_92 = arith.constant 0 : index
    %c0_93 = arith.constant 0 : index
    %124 = vector.load %arg11[%c0_92, %c0_93] : memref<1x16xf32, #tpu.memory_space<vmem>>, vector<1x16xf32>
    %125 = arith.addf %123, %124 : vector<1x16xf32>
    %126 = arith.negf %125 : vector<1x16xf32>
    %127 = math.exp %126 : vector<1x16xf32>
    %cst_94 = arith.constant 1.000000e+00 : f32
    %128 = vector.broadcast %cst_94 : f32 to vector<1x16xf32>
    %129 = arith.addf %128, %127 : vector<1x16xf32>
    %130 = arith.divf %128, %129 : vector<1x16xf32>
    %131 = vector.broadcast %130 : vector<1x16xf32> to vector<20x16xf32>
    %132 = arith.mulf %106, %131 : vector<20x16xf32>
    %133 = arith.truncf %132 : vector<20x16xf32> to vector<20x16xbf16>
    %c0_95 = arith.constant 0 : index
    %c0_96 = arith.constant 0 : index
    %134 = vector.load %arg12[%c0_95, %c0_96] : memref<16x16xbf16, #tpu.memory_space<vmem>>, vector<16x16xbf16>
    %cst_97 = arith.constant dense<0.000000e+00> : vector<20x16xf32>
    %135 = tpu.matmul %133, %134, %cst_97 {dimension_numbers = #tpu.dot_dimension_numbers<[1], [0], [0], [1], [0, 0, 1, 1], [], []>} : vector<20x16xbf16>, vector<16x16xbf16>, vector<20x16xf32> -> vector<20x16xf32>
    %c0_98 = arith.constant 0 : index
    %c0_99 = arith.constant 0 : index
    %136 = vector.load %arg13[%c0_98, %c0_99] : memref<1x16xf32, #tpu.memory_space<vmem>>, vector<1x16xf32>
    %137 = vector.broadcast %136 : vector<1x16xf32> to vector<20x16xf32>
    %138 = arith.addf %135, %137 : vector<20x16xf32>
    %c0_100 = arith.constant 0 : index
    %c3_101 = arith.constant 3 : index
    %c0_102 = arith.constant 0 : index
    %c0_103 = arith.constant 0 : index
    %139 = vector.load %arg1[%c0_100, %c3_101, %c0_102, %c0_103] : memref<1x4x30x8xbf16, #tpu.memory_space<vmem>>, vector<1x1x20x8xbf16>
    %140 = vector.shape_cast %139 : vector<1x1x20x8xbf16> to vector<20x8xbf16>
    %c0_104 = arith.constant 0 : index
    %c0_105 = arith.constant 0 : index
    %141 = vector.load %arg14[%c0_104, %c0_105] : memref<8x16xbf16, #tpu.memory_space<vmem>>, vector<8x16xbf16>
    %cst_106 = arith.constant dense<0.000000e+00> : vector<20x16xf32>
    %142 = tpu.matmul %140, %141, %cst_106 {dimension_numbers = #tpu.dot_dimension_numbers<[1], [0], [0], [1], [0, 0, 1, 1], [], []>} : vector<20x8xbf16>, vector<8x16xbf16>, vector<20x16xf32> -> vector<20x16xf32>
    %c0_107 = arith.constant 0 : index
    %c0_108 = arith.constant 0 : index
    %143 = vector.load %arg15[%c0_107, %c0_108] : memref<1x16xf32, #tpu.memory_space<vmem>>, vector<1x16xf32>
    %144 = vector.broadcast %143 : vector<1x16xf32> to vector<20x16xf32>
    %145 = arith.addf %142, %144 : vector<20x16xf32>
    %146 = arith.addf %138, %145 : vector<20x16xf32>
    %cst_109 = arith.constant 0.000000e+00 : f32
    %147 = vector.broadcast %cst_109 : f32 to vector<20x16xf32>
    %148 = arith.maximumf %146, %147 : vector<20x16xf32>
    %c0_110 = arith.constant 0 : index
    %c0_111 = arith.constant 0 : index
    %c0_112 = arith.constant 0 : index
    %149 = vector.load %arg16[%c0_110, %c0_111, %c0_112] : memref<1x20x16xf32, #tpu.memory_space<vmem>>, vector<1x20x16xf32>
    %150 = vector.shape_cast %149 : vector<1x20x16xf32> to vector<20x16xf32>
    %151 = vector.shape_cast %148 : vector<20x16xf32> to vector<1x20x16xf32>
    tpu.vector_store %arg16[%c0_110, %c0_111, %c0_112], %151 {strides = array<i32>} : memref<1x20x16xf32, #tpu.memory_space<vmem>>, vector<1x20x16xf32>,
    return
  }
  func.func @transform_0(%arg0: i32) -> (i32, i32, i32, i32) {
    %c0_i32 = arith.constant 0 : i32
    %c0_i32_0 = arith.constant 0 : i32
    %c0_i32_1 = arith.constant 0 : i32
    %c0_i32_2 = arith.constant 0 : i32
    return %arg0, %c0_i32, %c0_i32_0, %c0_i32_1 : i32, i32, i32, i32
  }
  func.func @transform_1(%arg0: i32) -> (i32, i32, i32) {
    %c0_i32 = arith.constant 0 : i32
    %c0_i32_0 = arith.constant 0 : i32
    %c0_i32_1 = arith.constant 0 : i32
    %c0_i32_2 = arith.constant 0 : i32
    return %c0_i32, %c0_i32_0, %c0_i32_1 : i32, i32, i32
  }
  func.func @transform_2(%arg0: i32) -> (i32, i32) {
    %c0_i32 = arith.constant 0 : i32
    %c0_i32_0 = arith.constant 0 : i32
    %c0_i32_1 = arith.constant 0 : i32
    return %c0_i32, %c0_i32_0 : i32, i32
  }
  func.func @transform_3(%arg0: i32) -> (i32, i32) {
    %c0_i32 = arith.constant 0 : i32
    %c0_i32_0 = arith.constant 0 : i32
    %c0_i32_1 = arith.constant 0 : i32
    return %c0_i32, %c0_i32_0 : i32, i32
  }
  func.func @transform_4(%arg0: i32) -> (i32, i32) {
    %c0_i32 = arith.constant 0 : i32
    %c0_i32_0 = arith.constant 0 : i32
    %c0_i32_1 = arith.constant 0 : i32
    return %c0_i32, %c0_i32_0 : i32, i32
  }
  func.func @transform_5(%arg0: i32) -> (i32, i32, i32) {
    %c0_i32 = arith.constant 0 : i32
    %c0_i32_0 = arith.constant 0 : i32
    %c0_i32_1 = arith.constant 0 : i32
    %c0_i32_2 = arith.constant 0 : i32
    return %c0_i32, %c0_i32_0, %c0_i32_1 : i32, i32, i32
  }
  func.func @transform_6(%arg0: i32) -> (i32, i32) {
    %c0_i32 = arith.constant 0 : i32
    %c0_i32_0 = arith.constant 0 : i32
    %c0_i32_1 = arith.constant 0 : i32
    return %c0_i32, %c0_i32_0 : i32, i32
  }
  func.func @transform_7(%arg0: i32) -> (i32, i32) {
    %c0_i32 = arith.constant 0 : i32
    %c0_i32_0 = arith.constant 0 : i32
    %c0_i32_1 = arith.constant 0 : i32
    return %c0_i32, %c0_i32_0 : i32, i32
  }
  func.func @transform_8(%arg0: i32) -> (i32, i32) {
    %c0_i32 = arith.constant 0 : i32
    %c0_i32_0 = arith.constant 0 : i32
    %c0_i32_1 = arith.constant 0 : i32
    return %c0_i32, %c0_i32_0 : i32, i32
  }
  func.func @transform_9(%arg0: i32) -> (i32, i32) {
    %c0_i32 = arith.constant 0 : i32
    %c0_i32_0 = arith.constant 0 : i32
    %c0_i32_1 = arith.constant 0 : i32
    return %c0_i32, %c0_i32_0 : i32, i32
  }
  func.func @transform_10(%arg0: i32) -> (i32, i32) {
    %c0_i32 = arith.constant 0 : i32
    %c0_i32_0 = arith.constant 0 : i32
    %c0_i32_1 = arith.constant 0 : i32
    return %c0_i32, %c0_i32_0 : i32, i32
  }
  func.func @transform_11(%arg0: i32) -> (i32, i32) {
    %c0_i32 = arith.constant 0 : i32
    %c0_i32_0 = arith.constant 0 : i32
    %c0_i32_1 = arith.constant 0 : i32
    return %c0_i32, %c0_i32_0 : i32, i32
  }
  func.func @transform_12(%arg0: i32) -> (i32, i32) {
    %c0_i32 = arith.constant 0 : i32
    %c0_i32_0 = arith.constant 0 : i32
    %c0_i32_1 = arith.constant 0 : i32
    return %c0_i32, %c0_i32_0 : i32, i32
  }
  func.func @transform_13(%arg0: i32) -> (i32, i32) {
    %c0_i32 = arith.constant 0 : i32
    %c0_i32_0 = arith.constant 0 : i32
    %c0_i32_1 = arith.constant 0 : i32
    return %c0_i32, %c0_i32_0 : i32, i32
  }
  func.func @transform_14(%arg0: i32) -> (i32, i32) {
    %c0_i32 = arith.constant 0 : i32
    %c0_i32_0 = arith.constant 0 : i32
    %c0_i32_1 = arith.constant 0 : i32
    return %c0_i32, %c0_i32_0 : i32, i32
  }
  func.func @transform_15(%arg0: i32) -> (i32, i32, i32) {
    %c0_i32 = arith.constant 0 : i32
    %c0_i32_0 = arith.constant 0 : i32
    %c0_i32_1 = arith.constant 0 : i32
    return %arg0, %c0_i32, %c0_i32_0 : i32, i32, i32
  }
}

</mosaic_0001>

<llo_original>
// kernel: res_bottleneck_block_pallas.1
$region0: #{res_bottleneck_block_pallas.1}
  #allocation0 [shape = 'u32[]', space=smem, size = 0x4, offset = 0x4, fixed_abs, tag = 'smem constant byte address 0x4 - core index']
  #allocation1 [shape = 'u32[144,128]{1,0:T(1,128)}', space=vmem, size = 0x12000, scoped, tag = 'internal scratch']
  %s0 = inlined_call_operand.hbm [shape: bf16[2,4,30,8], index: 0, kind: input, shape index: {}]
  %s1 = inlined_call_operand.hbm [shape: f32[4,30,1], index: 1, kind: input, shape index: {}]
  %s2 = inlined_call_operand.hbm [shape: f32[20,1], index: 2, kind: input, shape index: {}]
  %s3 = inlined_call_operand.hbm [shape: bf16[8,16], index: 3, kind: input, shape index: {}]
  %s4 = inlined_call_operand.hbm [shape: f32[1,16], index: 4, kind: input, shape index: {}]
  %s5 = inlined_call_operand.hbm [shape: bf16[1,144,16], index: 5, kind: input, shape index: {}]
  %s6 = inlined_call_operand.hbm [shape: f32[1,16], index: 6, kind: input, shape index: {}]
  %s7 = inlined_call_operand.hbm [shape: bf16[16,2], index: 7, kind: input, shape index: {}]
  %s8 = inlined_call_operand.hbm [shape: f32[1,2], index: 8, kind: input, shape index: {}]
  %s9 = inlined_call_operand.hbm [shape: bf16[2,16], index: 9, kind: input, shape index: {}]
  %s10 = inlined_call_operand.hbm [shape: f32[1,16], index: 10, kind: input, shape index: {}]
  %s11 = inlined_call_operand.hbm [shape: bf16[16,16], index: 11, kind: input, shape index: {}]
  %s12 = inlined_call_operand.hbm [shape: f32[1,16], index: 12, kind: input, shape index: {}]
  %s13 = inlined_call_operand.hbm [shape: bf16[8,16], index: 13, kind: input, shape index: {}]
  %s14 = inlined_call_operand.hbm [shape: f32[1,16], index: 14, kind: input, shape index: {}]
  %s15 = inlined_call_operand.hbm [shape: f32[2,20,16], index: 15, kind: output, shape index: {}]
  %s16 = sld [smem:[#allocation0]]
  $region153: #{res_bottleneck_block_pallas.1} parent=0
    _
  %s18 = ssub.s32 1, %s16
  %s19 = scalar_select 0, %s18, %s16
  $region1: #{res_bottleneck_block_pallas.1} parent=0
    #allocation2 [shape = 'u8[65536]{0}', space=vmem, size = 0x10000, scoped, tag = 'input window, operand 0']
    #allocation3 [shape = 's32[2]{0}', space=sflag, size = 0x8, scoped, tag = 'scoped memory for res_bottleneck_block_pallas.1']
    #allocation4 [shape = 's32[2]{0}', space=sflag, size = 0x8, scoped, tag = 'scoped memory for res_bottleneck_block_pallas.1']
    #allocation5 [shape = 'u8[65536]{0}', space=vmem, size = 0x10000, scoped, tag = 'input window, operand 1, single buffered']
    #allocation6 [shape = 's32[1]{0}', space=sflag, size = 0x4, scoped, tag = 'scoped memory for res_bottleneck_block_pallas.1']
    #allocation7 [shape = 'u8[12288]{0}', space=vmem, size = 0x3000, scoped, tag = 'input window, operand 2, single buffered']
    #allocation8 [shape = 'u8[2048]{0}', space=vmem, size = 0x800, scoped, tag = 'input window, operand 3, single buffered']
    #allocation9 [shape = 's32[1]{0}', space=sflag, size = 0x4, scoped, tag = 'scoped memory for res_bottleneck_block_pallas.1']
    #allocation10 [shape = 'u8[512]{0}', space=vmem, size = 0x400, scoped, tag = 'input window, operand 4, single buffered']
    #allocation11 [shape = 'u8[36864]{0}', space=vmem, size = 0x9000, scoped, tag = 'input window, operand 5, single buffered']
    #allocation12 [shape = 's32[1]{0}', space=sflag, size = 0x4, scoped, tag = 'scoped memory for res_bottleneck_block_pallas.1']
    #allocation13 [shape = 'u8[512]{0}', space=vmem, size = 0x400, scoped, tag = 'input window, operand 6, single buffered']
    #allocation14 [shape = 'u8[4096]{0}', space=vmem, size = 0x1000, scoped, tag = 'input window, operand 7, single buffered']
    #allocation15 [shape = 's32[1]{0}', space=sflag, size = 0x4, scoped, tag = 'scoped memory for res_bottleneck_block_pallas.1']
    #allocation16 [shape = 'u8[512]{0}', space=vmem, size = 0x400, scoped, tag = 'input window, operand 8, single buffered']
    #allocation17 [shape = 'u8[512]{0}', space=vmem, size = 0x400, scoped, tag = 'input window, operand 9, single buffered']
    #allocation18 [shape = 's32[1]{0}', space=sflag, size = 0x4, scoped, tag = 'scoped memory for res_bottleneck_block_pallas.1']
    #allocation19 [shape = 'u8[512]{0}', space=vmem, size = 0x400, scoped, tag = 'input window, operand 10, single buffered']
    #allocation20 [shape = 'u8[4096]{0}', space=vmem, size = 0x1000, scoped, tag = 'input window, operand 11, single buffered']
    #allocation21 [shape = 's32[1]{0}', space=sflag, size = 0x4, scoped, tag = 'scoped memory for res_bottleneck_block_pallas.1']
    #allocation22 [shape = 'u8[512]{0}', space=vmem, size = 0x400, scoped, tag = 'input window, operand 12, single buffered']
    #allocation23 [shape = 'u8[2048]{0}', space=vmem, size = 0x800, scoped, tag = 'input window, operand 13, single buffered']
    #allocation24 [shape = 's32[1]{0}', space=sflag, size = 0x4, scoped, tag = 'scoped memory for res_bottleneck_block_pallas.1']
    #allocation25 [shape = 'u8[512]{0}', space=vmem, size = 0x400, scoped, tag = 'input window, operand 14, single buffered']
    #allocation26 [shape = 'u8[24576]{0}', space=vmem, size = 0x6000, scoped, tag = 'output window, operand 0']
    %20 = vsyncpa [#allocation3], 0
    %s21 = scalar_lea.sflag [#allocation3], 1
    %22 = vsyncpa %s21, 0
    %23 = vsyncpa [#allocation6], 0
    %24 = vsyncpa [#allocation9], 0
    %25 = vsyncpa [#allocation12], 0
    %26 = vsyncpa [#allocation15], 0
    %27 = vsyncpa [#allocation18], 0
    %28 = vsyncpa [#allocation21], 0
    %29 = vsyncpa [#allocation24], 0
    %30 = vsyncpa [#allocation4], 0
    %s31 = scalar_lea.sflag [#allocation4], 1
    %32 = vsyncpa %s31, 0
    loop: start=0, step=1, limit=4
    $region2: #{res_bottleneck_block_pallas.1} parent=1 // loop_pre_header
      _
    $region3: #{res_bottleneck_block_pallas.1} parent=1 // loop_header
      %s34 = sphi 0, %s38
      %p35 = scmp.ge.s32.totalorder %s34, 4
      %s44 = sphi 0, %s46
      %s47 = sphi 0, %s44
      %s48 = sphi 0, %s47
      %s64 = sphi 0, %s48
      %s68 = sphi 0, %s68
      %s70 = sphi 0, %s68
      %s71 = sphi 0, %s70
      %s85 = sphi 0, %s71
      %s89 = sphi 0, %s89
      %s91 = sphi 0, %s89
      %s92 = sphi 0, %s91
      %s106 = sphi 0, %s92
      %s110 = sphi 0, %s110
      %s112 = sphi 0, %s110
      %s113 = sphi 0, %s112
      %s127 = sphi 0, %s113
      %s131 = sphi 0, %s131
      %s133 = sphi 0, %s131
      %s134 = sphi 0, %s133
      %s148 = sphi 0, %s134
      %s152 = sphi 0, %s152
      %s154 = sphi 0, %s152
      %s155 = sphi 0, %s154
      %s169 = sphi 0, %s155
      %s173 = sphi 0, %s173
      %s175 = sphi 0, %s173
      %s176 = sphi 0, %s175
      %s190 = sphi 0, %s176
      %s194 = sphi 0, %s194
      %s196 = sphi 0, %s194
      %s197 = sphi 0, %s196
      %s211 = sphi 0, %s197
      %s215 = sphi 0, %s215
      %s217 = sphi 0, %s215
      %s218 = sphi 0, %s217
      %s232 = sphi 0, %s218
      %s236 = sphi 0, %s236
      %s238 = sphi 0, %s236
      %s239 = sphi 0, %s238
      %s253 = sphi 0, %s239
      %s257 = sphi 0, %s257
      %s259 = sphi 0, %s257
      %s260 = sphi 0, %s259
      %s274 = sphi 0, %s260
      %s278 = sphi 0, %s278
      %s280 = sphi 0, %s278
      %s281 = sphi 0, %s280
      %s295 = sphi 0, %s281
      %s299 = sphi 0, %s299
      %s301 = sphi 0, %s299
      %s302 = sphi 0, %s301
      %s316 = sphi 0, %s302
      %s320 = sphi 0, %s320
      %s322 = sphi 0, %s320
      %s323 = sphi 0, %s322
      %s337 = sphi 0, %s323
      %s341 = sphi 0, %s341
      %s343 = sphi 0, %s341
      %s344 = sphi 0, %s343
      %s358 = sphi 0, %s344
      %s364 = sphi 0, %s366
      %s367 = sphi 0, %s364
      %s368 = sphi 0, %s367
      %s384 = sphi 0, %s368
    $region4: #{res_bottleneck_block_pallas.1} parent=1 // loop_header_branch
      %37 = sbr.rel (%p35) target = $region8
    $region5: #{res_bottleneck_block_pallas.1} parent=1 // loop_body
      %s39 = ssub.s32 %s34, 1
      %s40 = ssub.s32 %s34, 2
      %s41 = sadd.s32 %s34, 1
      %s42 = ssub.s32 %s34, %s41
      %p43 = scmp.eq.s32.totalorder %s42, 0
      %s45 = sadd.s32 %s44, 1
      %s46 = scalar_select %p43, %s44, %s45
      %p49 = pneg %p43
      %p50 = scmp.eq.s32.totalorder %s34, 1
      %p51 = por %p49, %p50
      %p52 = scmp.ne.s32.totalorder %s44, %s47
      %p53 = scmp.eq.s32.totalorder %s34, 0
      %p54 = por %p52, %p53
      %p55 = scmp.ne.s32.totalorder %s44, %s47
      %p56 = scmp.eq.s32.totalorder %s39, 1
      %p57 = por %p55, %p56
      %p58 = scmp.ne.s32.totalorder %s47, %s48
      %p59 = scmp.eq.s32.totalorder %s39, 0
      %p60 = por %p58, %p59
      %p61 = scmp.ne.s32.totalorder %s47, %s48
      %p62 = scmp.eq.s32.totalorder %s40, 1
      %p63 = por %p61, %p62
      %p65 = scmp.ne.s32.totalorder %s48, %s64
      %p66 = scmp.eq.s32.totalorder %s40, 0
      %p67 = por %p65, %p66
      %s69 = sadd.s32 %s68, 1
      %p72 = scmp.eq.s32.totalorder %s34, 1
      %p73 = scmp.ne.s32.totalorder %s68, %s70
      %p74 = scmp.eq.s32.totalorder %s34, 0
      %p75 = por %p73, %p74
      %p76 = scmp.ne.s32.totalorder %s68, %s70
      %p77 = scmp.eq.s32.totalorder %s39, 1
      %p78 = por %p76, %p77
      %p79 = scmp.ne.s32.totalorder %s70, %s71
      %p80 = scmp.eq.s32.totalorder %s39, 0
      %p81 = por %p79, %p80
      %p82 = scmp.ne.s32.totalorder %s70, %s71
      %p83 = scmp.eq.s32.totalorder %s40, 1
      %p84 = por %p82, %p83
      %p86 = scmp.ne.s32.totalorder %s71, %s85
      %p87 = scmp.eq.s32.totalorder %s40, 0
      %p88 = por %p86, %p87
      %s90 = sadd.s32 %s89, 1
      %p93 = scmp.eq.s32.totalorder %s34, 1
      %p94 = scmp.ne.s32.totalorder %s89, %s91
      %p95 = scmp.eq.s32.totalorder %s34, 0
      %p96 = por %p94, %p95
      %p97 = scmp.ne.s32.totalorder %s89, %s91
      %p98 = scmp.eq.s32.totalorder %s39, 1
      %p99 = por %p97, %p98
      %p100 = scmp.ne.s32.totalorder %s91, %s92
      %p101 = scmp.eq.s32.totalorder %s39, 0
      %p102 = por %p100, %p101
      %p103 = scmp.ne.s32.totalorder %s91, %s92
      %p104 = scmp.eq.s32.totalorder %s40, 1
      %p105 = por %p103, %p104
      %p107 = scmp.ne.s32.totalorder %s92, %s106
      %p108 = scmp.eq.s32.totalorder %s40, 0
      %p109 = por %p107, %p108
      %s111 = sadd.s32 %s110, 1
      %p114 = scmp.eq.s32.totalorder %s34, 1
      %p115 = scmp.ne.s32.totalorder %s110, %s112
      %p116 = scmp.eq.s32.totalorder %s34, 0
      %p117 = por %p115, %p116
      %p118 = scmp.ne.s32.totalorder %s110, %s112
      %p119 = scmp.eq.s32.totalorder %s39, 1
      %p120 = por %p118, %p119
      %p121 = scmp.ne.s32.totalorder %s112, %s113
      %p122 = scmp.eq.s32.totalorder %s39, 0
      %p123 = por %p121, %p122
      %p124 = scmp.ne.s32.totalorder %s112, %s113
      %p125 = scmp.eq.s32.totalorder %s40, 1
      %p126 = por %p124, %p125
      %p128 = scmp.ne.s32.totalorder %s113, %s127
      %p129 = scmp.eq.s32.totalorder %s40, 0
      %p130 = por %p128, %p129
      %s132 = sadd.s32 %s131, 1
      %p135 = scmp.eq.s32.totalorder %s34, 1
      %p136 = scmp.ne.s32.totalorder %s131, %s133
      %p137 = scmp.eq.s32.totalorder %s34, 0
      %p138 = por %p136, %p137
      %p139 = scmp.ne.s32.totalorder %s131, %s133
      %p140 = scmp.eq.s32.totalorder %s39, 1
      %p141 = por %p139, %p140
      %p142 = scmp.ne.s32.totalorder %s133, %s134
      %p143 = scmp.eq.s32.totalorder %s39, 0
      %p144 = por %p142, %p143
      %p145 = scmp.ne.s32.totalorder %s133, %s134
      %p146 = scmp.eq.s32.totalorder %s40, 1
      %p147 = por %p145, %p146
      %p149 = scmp.ne.s32.totalorder %s134, %s148
      %p150 = scmp.eq.s32.totalorder %s40, 0
      %p151 = por %p149, %p150
      %s153 = sadd.s32 %s152, 1
      %p156 = scmp.eq.s32.totalorder %s34, 1
      %p157 = scmp.ne.s32.totalorder %s152, %s154
      %p158 = scmp.eq.s32.totalorder %s34, 0
      %p159 = por %p157, %p158
      %p160 = scmp.ne.s32.totalorder %s152, %s154
      %p161 = scmp.eq.s32.totalorder %s39, 1
      %p162 = por %p160, %p161
      %p163 = scmp.ne.s32.totalorder %s154, %s155
      %p164 = scmp.eq.s32.totalorder %s39, 0
      %p165 = por %p163, %p164
      %p166 = scmp.ne.s32.totalorder %s154, %s155
      %p167 = scmp.eq.s32.totalorder %s40, 1
      %p168 = por %p166, %p167
      %p170 = scmp.ne.s32.totalorder %s155, %s169
      %p171 = scmp.eq.s32.totalorder %s40, 0
      %p172 = por %p170, %p171
      %s174 = sadd.s32 %s173, 1
      %p177 = scmp.eq.s32.totalorder %s34, 1
      %p178 = scmp.ne.s32.totalorder %s173, %s175
      %p179 = scmp.eq.s32.totalorder %s34, 0
      %p180 = por %p178, %p179
      %p181 = scmp.ne.s32.totalorder %s173, %s175
      %p182 = scmp.eq.s32.totalorder %s39, 1
      %p183 = por %p181, %p182
      %p184 = scmp.ne.s32.totalorder %s175, %s176
      %p185 = scmp.eq.s32.totalorder %s39, 0
      %p186 = por %p184, %p185
      %p187 = scmp.ne.s32.totalorder %s175, %s176
      %p188 = scmp.eq.s32.totalorder %s40, 1
      %p189 = por %p187, %p188
      %p191 = scmp.ne.s32.totalorder %s176, %s190
      %p192 = scmp.eq.s32.totalorder %s40, 0
      %p193 = por %p191, %p192
      %s195 = sadd.s32 %s194, 1
      %p198 = scmp.eq.s32.totalorder %s34, 1
      %p199 = scmp.ne.s32.totalorder %s194, %s196
      %p200 = scmp.eq.s32.totalorder %s34, 0
      %p201 = por %p199, %p200
      %p202 = scmp.ne.s32.totalorder %s194, %s196
      %p203 = scmp.eq.s32.totalorder %s39, 1
      %p204 = por %p202, %p203
      %p205 = scmp.ne.s32.totalorder %s196, %s197
      %p206 = scmp.eq.s32.totalorder %s39, 0
      %p207 = por %p205, %p206
      %p208 = scmp.ne.s32.totalorder %s196, %s197
      %p209 = scmp.eq.s32.totalorder %s40, 1
      %p210 = por %p208, %p209
      %p212 = scmp.ne.s32.totalorder %s197, %s211
      %p213 = scmp.eq.s32.totalorder %s40, 0
      %p214 = por %p212, %p213
      %s216 = sadd.s32 %s215, 1
      %p219 = scmp.eq.s32.totalorder %s34, 1
      %p220 = scmp.ne.s32.totalorder %s215, %s217
      %p221 = scmp.eq.s32.totalorder %s34, 0
      %p222 = por %p220, %p221
      %p223 = scmp.ne.s32.totalorder %s215, %s217
      %p224 = scmp.eq.s32.totalorder %s39, 1
      %p225 = por %p223, %p224
      %p226 = scmp.ne.s32.totalorder %s217, %s218
      %p227 = scmp.eq.s32.totalorder %s39, 0
      %p228 = por %p226, %p227
      %p229 = scmp.ne.s32.totalorder %s217, %s218
      %p230 = scmp.eq.s32.totalorder %s40, 1
      %p231 = por %p229, %p230
      %p233 = scmp.ne.s32.totalorder %s218, %s232
      %p234 = scmp.eq.s32.totalorder %s40, 0
      %p235 = por %p233, %p234
      %s237 = sadd.s32 %s236, 1
      %p240 = scmp.eq.s32.totalorder %s34, 1
      %p241 = scmp.ne.s32.totalorder %s236, %s238
      %p242 = scmp.eq.s32.totalorder %s34, 0
      %p243 = por %p241, %p242
      %p244 = scmp.ne.s32.totalorder %s236, %s238
      %p245 = scmp.eq.s32.totalorder %s39, 1
      %p246 = por %p244, %p245
      %p247 = scmp.ne.s32.totalorder %s238, %s239
      %p248 = scmp.eq.s32.totalorder %s39, 0
      %p249 = por %p247, %p248
      %p250 = scmp.ne.s32.totalorder %s238, %s239
      %p251 = scmp.eq.s32.totalorder %s40, 1
      %p252 = por %p250, %p251
      %p254 = scmp.ne.s32.totalorder %s239, %s253
      %p255 = scmp.eq.s32.totalorder %s40, 0
      %p256 = por %p254, %p255
      %s258 = sadd.s32 %s257, 1
      %p261 = scmp.eq.s32.totalorder %s34, 1
      %p262 = scmp.ne.s32.totalorder %s257, %s259
      %p263 = scmp.eq.s32.totalorder %s34, 0
      %p264 = por %p262, %p263
      %p265 = scmp.ne.s32.totalorder %s257, %s259
      %p266 = scmp.eq.s32.totalorder %s39, 1
      %p267 = por %p265, %p266
      %p268 = scmp.ne.s32.totalorder %s259, %s260
      %p269 = scmp.eq.s32.totalorder %s39, 0
      %p270 = por %p268, %p269
      %p271 = scmp.ne.s32.totalorder %s259, %s260
      %p272 = scmp.eq.s32.totalorder %s40, 1
      %p273 = por %p271, %p272
      %p275 = scmp.ne.s32.totalorder %s260, %s274
      %p276 = scmp.eq.s32.totalorder %s40, 0
      %p277 = por %p275, %p276
      %s279 = sadd.s32 %s278, 1
      %p282 = scmp.eq.s32.totalorder %s34, 1
      %p283 = scmp.ne.s32.totalorder %s278, %s280
      %p284 = scmp.eq.s32.totalorder %s34, 0
      %p285 = por %p283, %p284
      %p286 = scmp.ne.s32.totalorder %s278, %s280
      %p287 = scmp.eq.s32.totalorder %s39, 1
      %p288 = por %p286, %p287
      %p289 = scmp.ne.s32.totalorder %s280, %s281
      %p290 = scmp.eq.s32.totalorder %s39, 0
      %p291 = por %p289, %p290
      %p292 = scmp.ne.s32.totalorder %s280, %s281
      %p293 = scmp.eq.s32.totalorder %s40, 1
      %p294 = por %p292, %p293
      %p296 = scmp.ne.s32.totalorder %s281, %s295
      %p297 = scmp.eq.s32.totalorder %s40, 0
      %p298 = por %p296, %p297
      %s300 = sadd.s32 %s299, 1
      %p303 = scmp.eq.s32.totalorder %s34, 1
      %p304 = scmp.ne.s32.totalorder %s299, %s301
      %p305 = scmp.eq.s32.totalorder %s34, 0
      %p306 = por %p304, %p305
      %p307 = scmp.ne.s32.totalorder %s299, %s301
      %p308 = scmp.eq.s32.totalorder %s39, 1
      %p309 = por %p307, %p308
      %p310 = scmp.ne.s32.totalorder %s301, %s302
      %p311 = scmp.eq.s32.totalorder %s39, 0
      %p312 = por %p310, %p311
      %p313 = scmp.ne.s32.totalorder %s301, %s302
      %p314 = scmp.eq.s32.totalorder %s40, 1
      %p315 = por %p313, %p314
      %p317 = scmp.ne.s32.totalorder %s302, %s316
      %p318 = scmp.eq.s32.totalorder %s40, 0
      %p319 = por %p317, %p318
      %s321 = sadd.s32 %s320, 1
      %p324 = scmp.eq.s32.totalorder %s34, 1
      %p325 = scmp.ne.s32.totalorder %s320, %s322
      %p326 = scmp.eq.s32.totalorder %s34, 0
      %p327 = por %p325, %p326
      %p328 = scmp.ne.s32.totalorder %s320, %s322
      %p329 = scmp.eq.s32.totalorder %s39, 1
      %p330 = por %p328, %p329
      %p331 = scmp.ne.s32.totalorder %s322, %s323
      %p332 = scmp.eq.s32.totalorder %s39, 0
      %p333 = por %p331, %p332
      %p334 = scmp.ne.s32.totalorder %s322, %s323
      %p335 = scmp.eq.s32.totalorder %s40, 1
      %p336 = por %p334, %p335
      %p338 = scmp.ne.s32.totalorder %s323, %s337
      %p339 = scmp.eq.s32.totalorder %s40, 0
      %p340 = por %p338, %p339
      %s342 = sadd.s32 %s341, 1
      %p345 = scmp.eq.s32.totalorder %s34, 1
      %p346 = scmp.ne.s32.totalorder %s341, %s343
      %p347 = scmp.eq.s32.totalorder %s34, 0
      %p348 = por %p346, %p347
      %p349 = scmp.ne.s32.totalorder %s341, %s343
      %p350 = scmp.eq.s32.totalorder %s39, 1
      %p351 = por %p349, %p350
      %p352 = scmp.ne.s32.totalorder %s343, %s344
      %p353 = scmp.eq.s32.totalorder %s39, 0
      %p354 = por %p352, %p353
      %p355 = scmp.ne.s32.totalorder %s343, %s344
      %p356 = scmp.eq.s32.totalorder %s40, 1
      %p357 = por %p355, %p356
      %p359 = scmp.ne.s32.totalorder %s344, %s358
      %p360 = scmp.eq.s32.totalorder %s40, 0
      %p361 = por %p359, %p360
      %s362 = ssub.s32 %s34, %s41
      %p363 = scmp.eq.s32.totalorder %s362, 0
      %s365 = sadd.s32 %s364, 1
      %s366 = scalar_select %p363, %s364, %s365
      %p369 = pneg %p363
      %p370 = scmp.eq.s32.totalorder %s34, 1
      %p371 = por %p369, %p370
      %p372 = scmp.ne.s32.totalorder %s364, %s367
      %p373 = scmp.eq.s32.totalorder %s34, 0
      %p374 = por %p372, %p373
      %p375 = scmp.ne.s32.totalorder %s364, %s367
      %p376 = scmp.eq.s32.totalorder %s39, 1
      %p377 = por %p375, %p376
      %p378 = scmp.ne.s32.totalorder %s367, %s368
      %p379 = scmp.eq.s32.totalorder %s39, 0
      %p380 = por %p378, %p379
      %p381 = scmp.ne.s32.totalorder %s367, %s368
      %p382 = scmp.eq.s32.totalorder %s40, 1
      %p383 = por %p381, %p382
      %p385 = scmp.ne.s32.totalorder %s368, %s384
      %p386 = scmp.eq.s32.totalorder %s40, 0
      %p387 = por %p385, %p386
      %p388 = scmp.le.s32.totalorder 1, %s34
      %p389 = scmp.lt.s32.totalorder %s34, 3
      %p390 = pnand %p388, %p389
      %p391 = pneg %p390
      // Predicated region
      $region9: #{res_bottleneck_block_pallas.1} parent=5 // pred_check
        _
      $region10: #{res_bottleneck_block_pallas.1} parent=5 // pred_check_branch
        %393 = sbr.rel (%p390) target = $region12
      $region11: #{res_bottleneck_block_pallas.1} parent=5 // pred_region
        %s394 = ssub.s32 %s34, 1
        // Predicated region
        $region13: #{res_bottleneck_block_pallas.1} parent=11 // pred_check
          %p395 = pneg %p81
        $region14: #{res_bottleneck_block_pallas.1} parent=11 // pred_check_branch
          %397 = sbr.rel (%p395) target = $region16
        $region15: #{res_bottleneck_block_pallas.1} parent=11 // pred_region
          %s399 = ssub.s32 2048, 2048
          %400 = vsyncadd [#allocation6], %s399
          %s401 = sshll.u32 [#allocation5], 4
          %s402 = int_to_ptr.vmem [resolvable:$true] %s401
          %407 = dma.hbm_to_vmem [thread:$0]  %s1, 2048, %s402, [#allocation6], 128, 128, 8
        $region16: #{res_bottleneck_block_pallas.1} parent=11 // pred_fallthru
          _
        // Predicated region
        $region17: #{res_bottleneck_block_pallas.1} parent=11 // pred_check
          %p408 = pneg %p102
        $region18: #{res_bottleneck_block_pallas.1} parent=11 // pred_check_branch
          %410 = sbr.rel (%p408) target = $region20
        $region19: #{res_bottleneck_block_pallas.1} parent=11 // pred_region
          %s412 = ssub.s32 384, 384
          %413 = vsyncadd [#allocation6], %s412
          %s414 = sshll.u32 [#allocation7], 4
          %s415 = int_to_ptr.vmem [resolvable:$true] %s414
          %420 = dma.hbm_to_vmem [thread:$0]  %s2, 384, %s415, [#allocation6], 128, 128, 8
        $region20: #{res_bottleneck_block_pallas.1} parent=11 // pred_fallthru
          _
        // Predicated region
        $region21: #{res_bottleneck_block_pallas.1} parent=11 // pred_check
          %p421 = pneg %p123
        $region22: #{res_bottleneck_block_pallas.1} parent=11 // pred_check_branch
          %423 = sbr.rel (%p421) target = $region24
        $region23: #{res_bottleneck_block_pallas.1} parent=11 // pred_region
          %s425 = ssub.s32 64, 64
          %426 = vsyncadd [#allocation9], %s425
          %s428 = sshll.u32 [#allocation8], 4
          %s429 = int_to_ptr.vmem [resolvable:$true] %s428
          %431 = dma.hbm_to_vmem [thread:$0]  %s3, 64, %s429, [#allocation9]
        $region24: #{res_bottleneck_block_pallas.1} parent=11 // pred_fallthru
          _
        // Predicated region
        $region25: #{res_bottleneck_block_pallas.1} parent=11 // pred_check
          %p432 = pneg %p144
        $region26: #{res_bottleneck_block_pallas.1} parent=11 // pred_check_branch
          %434 = sbr.rel (%p432) target = $region28
        $region27: #{res_bottleneck_block_pallas.1} parent=11 // pred_region
          %s436 = ssub.s32 16, 16
          %437 = vsyncadd [#allocation9], %s436
          %s439 = sshll.u32 [#allocation10], 4
          %s440 = int_to_ptr.vmem [resolvable:$true] %s439
          %442 = dma.hbm_to_vmem [thread:$0]  %s4, 16, %s440, [#allocation9]
        $region28: #{res_bottleneck_block_pallas.1} parent=11 // pred_fallthru
          _
        // Predicated region
        $region29: #{res_bottleneck_block_pallas.1} parent=11 // pred_check
          %p443 = pneg %p165
        $region30: #{res_bottleneck_block_pallas.1} parent=11 // pred_check_branch
          %445 = sbr.rel (%p443) target = $region32
        $region31: #{res_bottleneck_block_pallas.1} parent=11 // pred_region
          %s447 = ssub.s32 1152, 1152
          %448 = vsyncadd [#allocation12], %s447
          %s449 = sshll.u32 [#allocation11], 4
          %s450 = int_to_ptr.vmem [resolvable:$true] %s449
          %455 = dma.hbm_to_vmem [thread:$0]  %s5, 1152, %s450, [#allocation12], 64, 64, 4
        $region32: #{res_bottleneck_block_pallas.1} parent=11 // pred_fallthru
          _
        // Predicated region
        $region33: #{res_bottleneck_block_pallas.1} parent=11 // pred_check
          %p456 = pneg %p186
        $region34: #{res_bottleneck_block_pallas.1} parent=11 // pred_check_branch
          %458 = sbr.rel (%p456) target = $region36
        $region35: #{res_bottleneck_block_pallas.1} parent=11 // pred_region
          %s460 = ssub.s32 16, 16
          %461 = vsyncadd [#allocation12], %s460
          %s463 = sshll.u32 [#allocation13], 4
          %s464 = int_to_ptr.vmem [resolvable:$true] %s463
          %466 = dma.hbm_to_vmem [thread:$0]  %s6, 16, %s464, [#allocation12]
        $region36: #{res_bottleneck_block_pallas.1} parent=11 // pred_fallthru
          _
        // Predicated region
        $region37: #{res_bottleneck_block_pallas.1} parent=11 // pred_check
          %p467 = pneg %p207
        $region38: #{res_bottleneck_block_pallas.1} parent=11 // pred_check_branch
          %469 = sbr.rel (%p467) target = $region40
        $region39: #{res_bottleneck_block_pallas.1} parent=11 // pred_region
          %s471 = ssub.s32 128, 128
          %472 = vsyncadd [#allocation15], %s471
          %s473 = sshll.u32 [#allocation14], 4
          %s474 = int_to_ptr.vmem [resolvable:$true] %s473
          %479 = dma.hbm_to_vmem [thread:$0]  %s7, 128, %s474, [#allocation15], 64, 64, 4
        $region40: #{res_bottleneck_block_pallas.1} parent=11 // pred_fallthru
          _
        // Predicated region
        $region41: #{res_bottleneck_block_pallas.1} parent=11 // pred_check
          %p480 = pneg %p228
        $region42: #{res_bottleneck_block_pallas.1} parent=11 // pred_check_branch
          %482 = sbr.rel (%p480) target = $region44
        $region43: #{res_bottleneck_block_pallas.1} parent=11 // pred_region
          %s484 = ssub.s32 16, 16
          %485 = vsyncadd [#allocation15], %s484
          %s487 = sshll.u32 [#allocation16], 4
          %s488 = int_to_ptr.vmem [resolvable:$true] %s487
          %490 = dma.hbm_to_vmem [thread:$0]  %s8, 16, %s488, [#allocation15]
        $region44: #{res_bottleneck_block_pallas.1} parent=11 // pred_fallthru
          _
        // Predicated region
        $region45: #{res_bottleneck_block_pallas.1} parent=11 // pred_check
          %p491 = pneg %p249
        $region46: #{res_bottleneck_block_pallas.1} parent=11 // pred_check_branch
          %493 = sbr.rel (%p491) target = $region48
        $region47: #{res_bottleneck_block_pallas.1} parent=11 // pred_region
          %s495 = ssub.s32 16, 16
          %496 = vsyncadd [#allocation18], %s495
          %s498 = sshll.u32 [#allocation17], 4
          %s499 = int_to_ptr.vmem [resolvable:$true] %s498
          %501 = dma.hbm_to_vmem [thread:$0]  %s9, 16, %s499, [#allocation18]
        $region48: #{res_bottleneck_block_pallas.1} parent=11 // pred_fallthru
          _
        // Predicated region
        $region49: #{res_bottleneck_block_pallas.1} parent=11 // pred_check
          %p502 = pneg %p270
        $region50: #{res_bottleneck_block_pallas.1} parent=11 // pred_check_branch
          %504 = sbr.rel (%p502) target = $region52
        $region51: #{res_bottleneck_block_pallas.1} parent=11 // pred_region
          %s506 = ssub.s32 16, 16
          %507 = vsyncadd [#allocation18], %s506
          %s509 = sshll.u32 [#allocation19], 4
          %s510 = int_to_ptr.vmem [resolvable:$true] %s509
          %512 = dma.hbm_to_vmem [thread:$0]  %s10, 16, %s510, [#allocation18]
        $region52: #{res_bottleneck_block_pallas.1} parent=11 // pred_fallthru
          _
        // Predicated region
        $region53: #{res_bottleneck_block_pallas.1} parent=11 // pred_check
          %p513 = pneg %p291
        $region54: #{res_bottleneck_block_pallas.1} parent=11 // pred_check_branch
          %515 = sbr.rel (%p513) target = $region56
        $region55: #{res_bottleneck_block_pallas.1} parent=11 // pred_region
          %s517 = ssub.s32 128, 128
          %518 = vsyncadd [#allocation21], %s517
          %s519 = sshll.u32 [#allocation20], 4
          %s520 = int_to_ptr.vmem [resolvable:$true] %s519
          %525 = dma.hbm_to_vmem [thread:$0]  %s11, 128, %s520, [#allocation21], 64, 64, 4
        $region56: #{res_bottleneck_block_pallas.1} parent=11 // pred_fallthru
          _
        // Predicated region
        $region57: #{res_bottleneck_block_pallas.1} parent=11 // pred_check
          %p526 = pneg %p312
        $region58: #{res_bottleneck_block_pallas.1} parent=11 // pred_check_branch
          %528 = sbr.rel (%p526) target = $region60
        $region59: #{res_bottleneck_block_pallas.1} parent=11 // pred_region
          %s530 = ssub.s32 16, 16
          %531 = vsyncadd [#allocation21], %s530
          %s533 = sshll.u32 [#allocation22], 4
          %s534 = int_to_ptr.vmem [resolvable:$true] %s533
          %536 = dma.hbm_to_vmem [thread:$0]  %s12, 16, %s534, [#allocation21]
        $region60: #{res_bottleneck_block_pallas.1} parent=11 // pred_fallthru
          _
        // Predicated region
        $region61: #{res_bottleneck_block_pallas.1} parent=11 // pred_check
          %p537 = pneg %p333
        $region62: #{res_bottleneck_block_pallas.1} parent=11 // pred_check_branch
          %539 = sbr.rel (%p537) target = $region64
        $region63: #{res_bottleneck_block_pallas.1} parent=11 // pred_region
          %s541 = ssub.s32 64, 64
          %542 = vsyncadd [#allocation24], %s541
          %s544 = sshll.u32 [#allocation23], 4
          %s545 = int_to_ptr.vmem [resolvable:$true] %s544
          %547 = dma.hbm_to_vmem [thread:$0]  %s13, 64, %s545, [#allocation24]
        $region64: #{res_bottleneck_block_pallas.1} parent=11 // pred_fallthru
          _
        // Predicated region
        $region65: #{res_bottleneck_block_pallas.1} parent=11 // pred_check
          %p548 = pneg %p354
        $region66: #{res_bottleneck_block_pallas.1} parent=11 // pred_check_branch
          %550 = sbr.rel (%p548) target = $region68
        $region67: #{res_bottleneck_block_pallas.1} parent=11 // pred_region
          %s552 = ssub.s32 16, 16
          %553 = vsyncadd [#allocation24], %s552
          %s555 = sshll.u32 [#allocation25], 4
          %s556 = int_to_ptr.vmem [resolvable:$true] %s555
          %558 = dma.hbm_to_vmem [thread:$0]  %s14, 16, %s556, [#allocation24]
        $region68: #{res_bottleneck_block_pallas.1} parent=11 // pred_fallthru
          _
      $region12: #{res_bottleneck_block_pallas.1} parent=5 // pred_fallthru
        _
      %p559 = scmp.lt.s32.totalorder %s34, 2
      // Predicated region
      $region69: #{res_bottleneck_block_pallas.1} parent=5 // pred_check
        %p560 = pneg %p559
      $region70: #{res_bottleneck_block_pallas.1} parent=5 // pred_check_branch
        %562 = sbr.rel (%p560) target = $region72
      $region71: #{res_bottleneck_block_pallas.1} parent=5 // pred_region
        // Predicated region
        $region73: #{res_bottleneck_block_pallas.1} parent=71 // pred_check
          %p563 = pneg %p54
        $region74: #{res_bottleneck_block_pallas.1} parent=71 // pred_check_branch
          %565 = sbr.rel (%p563) target = $region76
        $region75: #{res_bottleneck_block_pallas.1} parent=71 // pred_region
          %s566 = sand.u32 %s44, 1
          %s567 = scalar_lea.sflag [#allocation3], %s566
          %s568 = sand.u32 %s44, 1
          %s569 = smul.addr %s568, 64
          %s570 = scalar_lea.vmem [#allocation2], %s569
          %s572 = ssub.s32 1024, 1024
          %573 = vsyncadd %s567, %s572
          %s574 = smul.addr %s34, 16
          %s575 = smul.addr %s574, 64
          %s576 = scalar_lea.hbm %s0, %s575
          %s577 = sshll.u32 %s570, 4
          %s578 = int_to_ptr.vmem [resolvable:$true] %s577
          %583 = dma.hbm_to_vmem [thread:$0]  %s576, 1024, %s578, %s567, 64, 64, 4
        $region76: #{res_bottleneck_block_pallas.1} parent=71 // pred_fallthru
          _
      $region72: #{res_bottleneck_block_pallas.1} parent=5 // pred_fallthru
        _
      %p584 = scmp.le.s32.totalorder 1, %s34
      %p585 = scmp.lt.s32.totalorder %s34, 3
      %p586 = pnand %p584, %p585
      %p587 = pneg %p586
      // Predicated region
      $region77: #{res_bottleneck_block_pallas.1} parent=5 // pred_check
        _
      $region78: #{res_bottleneck_block_pallas.1} parent=5 // pred_check_branch
        %589 = sbr.rel (%p586) target = $region80
      $region79: #{res_bottleneck_block_pallas.1} parent=5 // pred_region
        %s590 = ssub.s32 %s34, 1
        %s591 = sand.u32 %s47, 1
        %s592 = scalar_lea.sflag [#allocation3], %s591
        %s593 = sand.u32 %s47, 1
        %s594 = smul.addr %s593, 64
        %s595 = scalar_lea.vmem [#allocation2], %s594
        // Predicated region
        $region81: #{res_bottleneck_block_pallas.1} parent=79 // pred_check
          %p596 = pneg %p60
        $region82: #{res_bottleneck_block_pallas.1} parent=79 // pred_check_branch
          %598 = sbr.rel (%p596) target = $region84
        $region83: #{res_bottleneck_block_pallas.1} parent=79 // pred_region
          %599 = dma.done %s592, 1024
        $region84: #{res_bottleneck_block_pallas.1} parent=79 // pred_fallthru
          _
        // Predicated region
        $region85: #{res_bottleneck_block_pallas.1} parent=79 // pred_check
          %p600 = pneg %p81
        $region86: #{res_bottleneck_block_pallas.1} parent=79 // pred_check_branch
          %602 = sbr.rel (%p600) target = $region88
        $region87: #{res_bottleneck_block_pallas.1} parent=79 // pred_region
          %603 = dma.done [#allocation6], 2048
        $region88: #{res_bottleneck_block_pallas.1} parent=79 // pred_fallthru
          _
        // Predicated region
        $region89: #{res_bottleneck_block_pallas.1} parent=79 // pred_check
          %p604 = pneg %p102
        $region90: #{res_bottleneck_block_pallas.1} parent=79 // pred_check_branch
          %606 = sbr.rel (%p604) target = $region92
        $region91: #{res_bottleneck_block_pallas.1} parent=79 // pred_region
          %607 = dma.done [#allocation6], 384
        $region92: #{res_bottleneck_block_pallas.1} parent=79 // pred_fallthru
          _
        // Predicated region
        $region93: #{res_bottleneck_block_pallas.1} parent=79 // pred_check
          %p608 = pneg %p123
        $region94: #{res_bottleneck_block_pallas.1} parent=79 // pred_check_branch
          %610 = sbr.rel (%p608) target = $region96
        $region95: #{res_bottleneck_block_pallas.1} parent=79 // pred_region
          %611 = dma.done [#allocation9], 64
        $region96: #{res_bottleneck_block_pallas.1} parent=79 // pred_fallthru
          _
        // Predicated region
        $region97: #{res_bottleneck_block_pallas.1} parent=79 // pred_check
          %p612 = pneg %p144
        $region98: #{res_bottleneck_block_pallas.1} parent=79 // pred_check_branch
          %614 = sbr.rel (%p612) target = $region100
        $region99: #{res_bottleneck_block_pallas.1} parent=79 // pred_region
          %615 = dma.done [#allocation9], 16
        $region100: #{res_bottleneck_block_pallas.1} parent=79 // pred_fallthru
          _
        // Predicated region
        $region101: #{res_bottleneck_block_pallas.1} parent=79 // pred_check
          %p616 = pneg %p165
        $region102: #{res_bottleneck_block_pallas.1} parent=79 // pred_check_branch
          %618 = sbr.rel (%p616) target = $region104
        $region103: #{res_bottleneck_block_pallas.1} parent=79 // pred_region
          %619 = dma.done [#allocation12], 1152
        $region104: #{res_bottleneck_block_pallas.1} parent=79 // pred_fallthru
          _
        // Predicated region
        $region105: #{res_bottleneck_block_pallas.1} parent=79 // pred_check
          %p620 = pneg %p186
        $region106: #{res_bottleneck_block_pallas.1} parent=79 // pred_check_branch
          %622 = sbr.rel (%p620) target = $region108
        $region107: #{res_bottleneck_block_pallas.1} parent=79 // pred_region
          %623 = dma.done [#allocation12], 16
        $region108: #{res_bottleneck_block_pallas.1} parent=79 // pred_fallthru
          _
        // Predicated region
        $region109: #{res_bottleneck_block_pallas.1} parent=79 // pred_check
          %p624 = pneg %p207
        $region110: #{res_bottleneck_block_pallas.1} parent=79 // pred_check_branch
          %626 = sbr.rel (%p624) target = $region112
        $region111: #{res_bottleneck_block_pallas.1} parent=79 // pred_region
          %627 = dma.done [#allocation15], 128
        $region112: #{res_bottleneck_block_pallas.1} parent=79 // pred_fallthru
          _
        // Predicated region
        $region113: #{res_bottleneck_block_pallas.1} parent=79 // pred_check
          %p628 = pneg %p228
        $region114: #{res_bottleneck_block_pallas.1} parent=79 // pred_check_branch
          %630 = sbr.rel (%p628) target = $region116
        $region115: #{res_bottleneck_block_pallas.1} parent=79 // pred_region
          %631 = dma.done [#allocation15], 16
        $region116: #{res_bottleneck_block_pallas.1} parent=79 // pred_fallthru
          _
        // Predicated region
        $region117: #{res_bottleneck_block_pallas.1} parent=79 // pred_check
          %p632 = pneg %p249
        $region118: #{res_bottleneck_block_pallas.1} parent=79 // pred_check_branch
          %634 = sbr.rel (%p632) target = $region120
        $region119: #{res_bottleneck_block_pallas.1} parent=79 // pred_region
          %635 = dma.done [#allocation18], 16
        $region120: #{res_bottleneck_block_pallas.1} parent=79 // pred_fallthru
          _
        // Predicated region
        $region121: #{res_bottleneck_block_pallas.1} parent=79 // pred_check
          %p636 = pneg %p270
        $region122: #{res_bottleneck_block_pallas.1} parent=79 // pred_check_branch
          %638 = sbr.rel (%p636) target = $region124
        $region123: #{res_bottleneck_block_pallas.1} parent=79 // pred_region
          %639 = dma.done [#allocation18], 16
        $region124: #{res_bottleneck_block_pallas.1} parent=79 // pred_fallthru
          _
        // Predicated region
        $region125: #{res_bottleneck_block_pallas.1} parent=79 // pred_check
          %p640 = pneg %p291
        $region126: #{res_bottleneck_block_pallas.1} parent=79 // pred_check_branch
          %642 = sbr.rel (%p640) target = $region128
        $region127: #{res_bottleneck_block_pallas.1} parent=79 // pred_region
          %643 = dma.done [#allocation21], 128
        $region128: #{res_bottleneck_block_pallas.1} parent=79 // pred_fallthru
          _
        // Predicated region
        $region129: #{res_bottleneck_block_pallas.1} parent=79 // pred_check
          %p644 = pneg %p312
        $region130: #{res_bottleneck_block_pallas.1} parent=79 // pred_check_branch
          %646 = sbr.rel (%p644) target = $region132
        $region131: #{res_bottleneck_block_pallas.1} parent=79 // pred_region
          %647 = dma.done [#allocation21], 16
        $region132: #{res_bottleneck_block_pallas.1} parent=79 // pred_fallthru
          _
        // Predicated region
        $region133: #{res_bottleneck_block_pallas.1} parent=79 // pred_check
          %p648 = pneg %p333
        $region134: #{res_bottleneck_block_pallas.1} parent=79 // pred_check_branch
          %650 = sbr.rel (%p648) target = $region136
        $region135: #{res_bottleneck_block_pallas.1} parent=79 // pred_region
          %651 = dma.done [#allocation24], 64
        $region136: #{res_bottleneck_block_pallas.1} parent=79 // pred_fallthru
          _
        // Predicated region
        $region137: #{res_bottleneck_block_pallas.1} parent=79 // pred_check
          %p652 = pneg %p354
        $region138: #{res_bottleneck_block_pallas.1} parent=79 // pred_check_branch
          %654 = sbr.rel (%p652) target = $region140
        $region139: #{res_bottleneck_block_pallas.1} parent=79 // pred_region
          %655 = dma.done [#allocation24], 16
        $region140: #{res_bottleneck_block_pallas.1} parent=79 // pred_fallthru
          _
        %s656 = sand.u32 %s47, 1
        %s657 = scalar_lea.sflag [#allocation3], %s656
        %s658 = sand.u32 %s47, 1
        %s659 = smul.addr %s658, 64
        %s660 = scalar_lea.vmem [#allocation2], %s659
        %p661 = pneg %p60
        %p662 = pneg %p57
        %p663 = pneg %p81
        %p664 = pneg %p78
        %p665 = pneg %p102
        %p666 = pneg %p99
        %p667 = pneg %p123
        %p668 = pneg %p120
        %p669 = pneg %p144
        %p670 = pneg %p141
        %p671 = pneg %p165
        %p672 = pneg %p162
        %p673 = pneg %p186
        %p674 = pneg %p183
        %p675 = pneg %p207
        %p676 = pneg %p204
        %p677 = pneg %p228
        %p678 = pneg %p225
        %p679 = pneg %p249
        %p680 = pneg %p246
        %p681 = pneg %p270
        %p682 = pneg %p267
        %p683 = pneg %p291
        %p684 = pneg %p288
        %p685 = pneg %p312
        %p686 = pneg %p309
        %p687 = pneg %p333
        %p688 = pneg %p330
        %p689 = pneg %p354
        %p690 = pneg %p351
        %p691 = pneg %p380
        %p692 = pneg %p377
        %s693 = sand.u32 %s367, 1
        %s694 = scalar_lea.sflag [#allocation4], %s693
        %s695 = sand.u32 %s367, 1
        %s696 = smul.addr %s695, 24
        %s697 = scalar_lea.vmem [#allocation26], %s696
        %v699 = vld [vmem:[%s595] sm:$0xf]
        %v700 = vld [vmem:[%s595 + $0x4] sm:$0xf]
        %v701 = vld [vmem:[%s595 + $0x8] sm:$0xf]
        %v702 = vld [vmem:[%s595 + $0xc] sm:$0x7]
        %v703 = vld [vmem:[#allocation8] sm:$0xf]
        %v704 = vld [vmem:[#allocation10] sm:$0x1]
        %v706 = vlaneseq
        %v707 = vshrl.u32 %v706, 7
        %v708 = vsub.s32 0, %v707
        %v709 = vrot.slane %v704, %v708
        %v715 = vunpack.c.l.b16 %v699
        %v716 = vunpack.c.l.b16 %v700
        %v717 = vunpack.c.l.b16 %v701
        %v718 = vunpack.c.l.b16 %v702
        %v719 = vpack.c.b16 %v716, %v715
        %v720 = vpack.c.b16 %v718, %v717
        %vm721 = vcmask 64512
        %v723 = vsel %vm721, %v719, 0
        %v726 = vsel %vm721, %v720, 0
        %vm728 = vcmask 1043456
        %v730 = vsel %vm728, %v703, 0
        %732 = vmatprep.subr.bf16.mxu0 0
        %733 = vmatpush1.bf16.msra.mxu0 %v730
        %734 = vmatprep.subr.bf16.mxu0 0
        %735 = vmatpush1.bf16.msra.mxu0 0
        %736 = vmatprep.subr.bf16.mxu0 0
        %737 = vmatpush1.bf16.msra.mxu0 0
        %738 = vmatprep.subr.bf16.mxu0 0
        %739 = vmatpush1.bf16.msra.mxu0 0
        %740 = vmatprep.subr.bf16.mxu0 0
        %741 = vmatpush1.bf16.msra.mxu0 0
        %742 = vmatprep.subr.bf16.mxu0 0
        %743 = vmatpush1.bf16.msra.mxu0 0
        %744 = vmatprep.subr.bf16.mxu0 0
        %745 = vmatpush1.bf16.msra.mxu0 0
        %746 = vmatprep.subr.bf16.mxu0 0
        %747 = vmatpush1.bf16.msra.mxu0 0
        %748 = vmatprep.subr.bf16.mxu0 0
        %749 = vmatpush1.bf16.msra.mxu0 0
        %750 = vmatprep.subr.bf16.mxu0 0
        %751 = vmatpush1.bf16.msra.mxu0 0
        %752 = vmatprep.subr.bf16.mxu0 0
        %753 = vmatpush1.bf16.msra.mxu0 0
        %754 = vmatprep.subr.bf16.mxu0 0
        %755 = vmatpush1.bf16.msra.mxu0 0
        %756 = vmatprep.subr.bf16.mxu0 0
        %757 = vmatpush1.bf16.msra.mxu0 0
        %758 = vmatprep.subr.bf16.mxu0 0
        %759 = vmatpush1.bf16.msra.mxu0 0
        %760 = vmatprep.subr.bf16.mxu0 0
        %761 = vmatpush1.bf16.msra.mxu0 0
        %762 = vmatprep.subr.bf16.mxu0 0
        %763 = vmatpush1.bf16.msra.mxu0 0
        %764 = vmatprep.mubr.bf16.mxu0 0
        %765 = vmatmul.mubr.bf16.gmra.mrb[0].mxu0 %v723
        %v766 = vpop.f32.mrb[0].mxu0
        %v767 = vadd.f32 %v709, %v766
        %v768 = vpop.f32.mrb[0].mxu0
        %v769 = vpop.f32.mrb[0].mxu0
        %v770 = vadd.f32 %v709, %v769
        %v771 = vpop.f32.mrb[0].mxu0
        %772 = vmatprep.mubr.bf16.mxu0 0
        %773 = vmatmul.mubr.bf16.gmra.mrb[0].mxu0 %v726
        %v774 = vpop.f32.mrb[0].mxu0
        %v775 = vadd.f32 %v709, %v774
        %v776 = vpop.f32.mrb[0].mxu0
        %v777 = vpop.f32.mrb[0].mxu0
        %v778 = vadd.f32 %v709, %v777
        %v779 = vpop.f32.mrb[0].mxu0
        %780 = vdwg.mxu0
        %v781 = vmax.f32 %v767, 0.0
        %v782 = vmax.f32 %v770, 0.0
        %v783 = vmax.f32 %v775, 0.0
        %v784 = vmax.f32 %v778, 0.0
        %v785 = vld [vmem:[#allocation5] sm:$0xff]
        %v786 = vld [vmem:[#allocation5 + $0x8] sm:$0xff]
        %v787 = vld [vmem:[#allocation5 + $0x10] sm:$0xff]
        %v788 = vld [vmem:[#allocation5 + $0x18] sm:$0x3f]
        %790 = vset.pattern.permute.xlu0 0
        %791 = vperm.xlu0 %790, %v785
        %v792 = vpop.permute.xlu0 %791
        %795 = vset.pattern.permute.xlu0 0
        %796 = vperm.xlu0 %795, %v786
        %v797 = vpop.permute.xlu0 %796
        %800 = vset.pattern.permute.xlu0 0
        %801 = vperm.xlu0 %800, %v787
        %v802 = vpop.permute.xlu0 %801
        %805 = vset.pattern.permute.xlu0 0
        %806 = vperm.xlu0 %805, %v788
        %v807 = vpop.permute.xlu0 %806
        %v809 = vmul.f32 %v781, %v792
        %v810 = vmul.f32 %v782, %v797
        %v811 = vmul.f32 %v783, %v802
        %v812 = vmul.f32 %v784, %v807
        %v813 = vpack.c.bf16 %v810, %v809
        %v814 = vpack.c.bf16 %v812, %v811
        %s815 = scalar_lea.vmem %s595, 16 [#allocation2]
        %v816 = vld [vmem:[%s815] sm:$0xf]
        %v817 = vld [vmem:[%s815 + $0x4] sm:$0xf]
        %v818 = vld [vmem:[%s815 + $0x8] sm:$0xf]
        %v819 = vld [vmem:[%s815 + $0xc] sm:$0x7]
        %v824 = vunpack.c.l.b16 %v816
        %v825 = vunpack.c.l.b16 %v817
        %v826 = vunpack.c.l.b16 %v818
        %v827 = vunpack.c.l.b16 %v819
        %v828 = vpack.c.b16 %v825, %v824
        %v829 = vpack.c.b16 %v827, %v826
        %v831 = vsel %vm721, %v828, 0
        %v834 = vsel %vm721, %v829, 0
        %836 = vmatprep.subr.bf16.mxu0 0
        %837 = vmatpush1.bf16.msra.mxu0 %v730
        %838 = vmatprep.subr.bf16.mxu0 0
        %839 = vmatpush1.bf16.msra.mxu0 0
        %840 = vmatprep.subr.bf16.mxu0 0
        %841 = vmatpush1.bf16.msra.mxu0 0
        %842 = vmatprep.subr.bf16.mxu0 0
        %843 = vmatpush1.bf16.msra.mxu0 0
        %844 = vmatprep.subr.bf16.mxu0 0
        %845 = vmatpush1.bf16.msra.mxu0 0
        %846 = vmatprep.subr.bf16.mxu0 0
        %847 = vmatpush1.bf16.msra.mxu0 0
        %848 = vmatprep.subr.bf16.mxu0 0
        %849 = vmatpush1.bf16.msra.mxu0 0
        %850 = vmatprep.subr.bf16.mxu0 0
        %851 = vmatpush1.bf16.msra.mxu0 0
        %852 = vmatprep.subr.bf16.mxu0 0
        %853 = vmatpush1.bf16.msra.mxu0 0
        %854 = vmatprep.subr.bf16.mxu0 0
        %855 = vmatpush1.bf16.msra.mxu0 0
        %856 = vmatprep.subr.bf16.mxu0 0
        %857 = vmatpush1.bf16.msra.mxu0 0
        %858 = vmatprep.subr.bf16.mxu0 0
        %859 = vmatpush1.bf16.msra.mxu0 0
        %860 = vmatprep.subr.bf16.mxu0 0
        %861 = vmatpush1.bf16.msra.mxu0 0
        %862 = vmatprep.subr.bf16.mxu0 0
        %863 = vmatpush1.bf16.msra.mxu0 0
        %864 = vmatprep.subr.bf16.mxu0 0
        %865 = vmatpush1.bf16.msra.mxu0 0
        %866 = vmatprep.subr.bf16.mxu0 0
        %867 = vmatpush1.bf16.msra.mxu0 0
        %868 = vmatprep.mubr.bf16.mxu0 0
        %869 = vmatmul.mubr.bf16.gmra.mrb[0].mxu0 %v831
        %v870 = vpop.f32.mrb[0].mxu0
        %v871 = vadd.f32 %v709, %v870
        %v872 = vpop.f32.mrb[0].mxu0
        %v873 = vpop.f32.mrb[0].mxu0
        %v874 = vadd.f32 %v709, %v873
        %v875 = vpop.f32.mrb[0].mxu0
        %876 = vmatprep.mubr.bf16.mxu0 0
        %877 = vmatmul.mubr.bf16.gmra.mrb[0].mxu0 %v834
        %v878 = vpop.f32.mrb[0].mxu0
        %v879 = vadd.f32 %v709, %v878
        %v880 = vpop.f32.mrb[0].mxu0
        %v881 = vpop.f32.mrb[0].mxu0
        %v882 = vadd.f32 %v709, %v881
        %v883 = vpop.f32.mrb[0].mxu0
        %884 = vdwg.mxu0
        %v885 = vmax.f32 %v871, 0.0
        %v886 = vmax.f32 %v874, 0.0
        %v887 = vmax.f32 %v879, 0.0
        %v888 = vmax.f32 %v882, 0.0
        %s889 = scalar_lea.vmem [#allocation5], 32
        %v890 = vld [vmem:[%s889] sm:$0xff]
        %v891 = vld [vmem:[%s889 + $0x8] sm:$0xff]
        %v892 = vld [vmem:[%s889 + $0x10] sm:$0xff]
        %v893 = vld [vmem:[%s889 + $0x18] sm:$0x3f]
        %895 = vset.pattern.permute.xlu0 0
        %896 = vperm.xlu0 %895, %v890
        %v897 = vpop.permute.xlu0 %896
        %900 = vset.pattern.permute.xlu0 0
        %901 = vperm.xlu0 %900, %v891
        %v902 = vpop.permute.xlu0 %901
        %905 = vset.pattern.permute.xlu0 0
        %906 = vperm.xlu0 %905, %v892
        %v907 = vpop.permute.xlu0 %906
        %910 = vset.pattern.permute.xlu0 0
        %911 = vperm.xlu0 %910, %v893
        %v912 = vpop.permute.xlu0 %911
        %v914 = vmul.f32 %v885, %v897
        %v915 = vmul.f32 %v886, %v902
        %v916 = vmul.f32 %v887, %v907
        %v917 = vmul.f32 %v888, %v912
        %v918 = vpack.c.bf16 %v915, %v914
        %v919 = vpack.c.bf16 %v917, %v916
        %s920 = scalar_lea.vmem %s595, 32 [#allocation2]
        %v921 = vld [vmem:[%s920] sm:$0xf]
        %v922 = vld [vmem:[%s920 + $0x4] sm:$0xf]
        %v923 = vld [vmem:[%s920 + $0x8] sm:$0xf]
        %v924 = vld [vmem:[%s920 + $0xc] sm:$0x7]
        %v929 = vunpack.c.l.b16 %v921
        %v930 = vunpack.c.l.b16 %v922
        %v931 = vunpack.c.l.b16 %v923
        %v932 = vunpack.c.l.b16 %v924
        %v933 = vpack.c.b16 %v930, %v929
        %v934 = vpack.c.b16 %v932, %v931
        %v936 = vsel %vm721, %v933, 0
        %v939 = vsel %vm721, %v934, 0
        %941 = vmatprep.subr.bf16.mxu0 0
        %942 = vmatpush1.bf16.msra.mxu0 %v730
        %943 = vmatprep.subr.bf16.mxu0 0
        %944 = vmatpush1.bf16.msra.mxu0 0
        %945 = vmatprep.subr.bf16.mxu0 0
        %946 = vmatpush1.bf16.msra.mxu0 0
        %947 = vmatprep.subr.bf16.mxu0 0
        %948 = vmatpush1.bf16.msra.mxu0 0
        %949 = vmatprep.subr.bf16.mxu0 0
        %950 = vmatpush1.bf16.msra.mxu0 0
        %951 = vmatprep.subr.bf16.mxu0 0
        %952 = vmatpush1.bf16.msra.mxu0 0
        %953 = vmatprep.subr.bf16.mxu0 0
        %954 = vmatpush1.bf16.msra.mxu0 0
        %955 = vmatprep.subr.bf16.mxu0 0
        %956 = vmatpush1.bf16.msra.mxu0 0
        %957 = vmatprep.subr.bf16.mxu0 0
        %958 = vmatpush1.bf16.msra.mxu0 0
        %959 = vmatprep.subr.bf16.mxu0 0
        %960 = vmatpush1.bf16.msra.mxu0 0
        %961 = vmatprep.subr.bf16.mxu0 0
        %962 = vmatpush1.bf16.msra.mxu0 0
        %963 = vmatprep.subr.bf16.mxu0 0
        %964 = vmatpush1.bf16.msra.mxu0 0
        %965 = vmatprep.subr.bf16.mxu0 0
        %966 = vmatpush1.bf16.msra.mxu0 0
        %967 = vmatprep.subr.bf16.mxu0 0
        %968 = vmatpush1.bf16.msra.mxu0 0
        %969 = vmatprep.subr.bf16.mxu0 0
        %970 = vmatpush1.bf16.msra.mxu0 0
        %971 = vmatprep.subr.bf16.mxu0 0
        %972 = vmatpush1.bf16.msra.mxu0 0
        %973 = vmatprep.mubr.bf16.mxu0 0
        %974 = vmatmul.mubr.bf16.gmra.mrb[0].mxu0 %v936
        %v975 = vpop.f32.mrb[0].mxu0
        %v976 = vadd.f32 %v709, %v975
        %v977 = vpop.f32.mrb[0].mxu0
        %v978 = vpop.f32.mrb[0].mxu0
        %v979 = vadd.f32 %v709, %v978
        %v980 = vpop.f32.mrb[0].mxu0
        %981 = vmatprep.mubr.bf16.mxu0 0
        %982 = vmatmul.mubr.bf16.gmra.mrb[0].mxu0 %v939
        %v983 = vpop.f32.mrb[0].mxu0
        %v984 = vadd.f32 %v709, %v983
        %v985 = vpop.f32.mrb[0].mxu0
        %v986 = vpop.f32.mrb[0].mxu0
        %v987 = vadd.f32 %v709, %v986
        %v988 = vpop.f32.mrb[0].mxu0
        %989 = vdwg.mxu0
        %v990 = vmax.f32 %v976, 0.0
        %v991 = vmax.f32 %v979, 0.0
        %v992 = vmax.f32 %v984, 0.0
        %v993 = vmax.f32 %v987, 0.0
        %s994 = scalar_lea.vmem [#allocation5], 64
        %v995 = vld [vmem:[%s994] sm:$0xff]
        %v996 = vld [vmem:[%s994 + $0x8] sm:$0xff]
        %v997 = vld [vmem:[%s994 + $0x10] sm:$0xff]
        %v998 = vld [vmem:[%s994 + $0x18] sm:$0x3f]
        %1000 = vset.pattern.permute.xlu0 0
        %1001 = vperm.xlu0 %1000, %v995
        %v1002 = vpop.permute.xlu0 %1001
        %1005 = vset.pattern.permute.xlu0 0
        %1006 = vperm.xlu0 %1005, %v996
        %v1007 = vpop.permute.xlu0 %1006
        %1010 = vset.pattern.permute.xlu0 0
        %1011 = vperm.xlu0 %1010, %v997
        %v1012 = vpop.permute.xlu0 %1011
        %1015 = vset.pattern.permute.xlu0 0
        %1016 = vperm.xlu0 %1015, %v998
        %v1017 = vpop.permute.xlu0 %1016
        %v1019 = vmul.f32 %v990, %v1002
        %v1020 = vmul.f32 %v991, %v1007
        %v1021 = vmul.f32 %v992, %v1012
        %v1022 = vmul.f32 %v993, %v1017
        %v1023 = vpack.c.bf16 %v1020, %v1019
        %v1024 = vpack.c.bf16 %v1022, %v1021
        %s1025 = scalar_lea.vmem %s595, 48 [#allocation2]
        %v1026 = vld [vmem:[%s1025] sm:$0xf]
        %v1027 = vld [vmem:[%s1025 + $0x4] sm:$0xf]
        %v1028 = vld [vmem:[%s1025 + $0x8] sm:$0xf]
        %v1029 = vld [vmem:[%s1025 + $0xc] sm:$0x7]
        %v1034 = vunpack.c.l.b16 %v1026
        %v1035 = vunpack.c.l.b16 %v1027
        %v1036 = vunpack.c.l.b16 %v1028
        %v1037 = vunpack.c.l.b16 %v1029
        %v1038 = vpack.c.b16 %v1035, %v1034
        %v1039 = vpack.c.b16 %v1037, %v1036
        %v1041 = vsel %vm721, %v1038, 0
        %v1044 = vsel %vm721, %v1039, 0
        %1046 = vmatprep.subr.bf16.mxu0 0
        %1047 = vmatpush1.bf16.msra.mxu0 %v730
        %1048 = vmatprep.subr.bf16.mxu0 0
        %1049 = vmatpush1.bf16.msra.mxu0 0
        %1050 = vmatprep.subr.bf16.mxu0 0
        %1051 = vmatpush1.bf16.msra.mxu0 0
        %1052 = vmatprep.subr.bf16.mxu0 0
        %1053 = vmatpush1.bf16.msra.mxu0 0
        %1054 = vmatprep.subr.bf16.mxu0 0
        %1055 = vmatpush1.bf16.msra.mxu0 0
        %1056 = vmatprep.subr.bf16.mxu0 0
        %1057 = vmatpush1.bf16.msra.mxu0 0
        %1058 = vmatprep.subr.bf16.mxu0 0
        %1059 = vmatpush1.bf16.msra.mxu0 0
        %1060 = vmatprep.subr.bf16.mxu0 0
        %1061 = vmatpush1.bf16.msra.mxu0 0
        %1062 = vmatprep.subr.bf16.mxu0 0
        %1063 = vmatpush1.bf16.msra.mxu0 0
        %1064 = vmatprep.subr.bf16.mxu0 0
        %1065 = vmatpush1.bf16.msra.mxu0 0
        %1066 = vmatprep.subr.bf16.mxu0 0
        %1067 = vmatpush1.bf16.msra.mxu0 0
        %1068 = vmatprep.subr.bf16.mxu0 0
        %1069 = vmatpush1.bf16.msra.mxu0 0
        %1070 = vmatprep.subr.bf16.mxu0 0
        %1071 = vmatpush1.bf16.msra.mxu0 0
        %1072 = vmatprep.subr.bf16.mxu0 0
        %1073 = vmatpush1.bf16.msra.mxu0 0
        %1074 = vmatprep.subr.bf16.mxu0 0
        %1075 = vmatpush1.bf16.msra.mxu0 0
        %1076 = vmatprep.subr.bf16.mxu0 0
        %1077 = vmatpush1.bf16.msra.mxu0 0
        %1078 = vmatprep.mubr.bf16.mxu0 0
        %1079 = vmatmul.mubr.bf16.gmra.mrb[0].mxu0 %v1041
        %v1080 = vpop.f32.mrb[0].mxu0
        %v1081 = vadd.f32 %v709, %v1080
        %v1082 = vpop.f32.mrb[0].mxu0
        %v1083 = vpop.f32.mrb[0].mxu0
        %v1084 = vadd.f32 %v709, %v1083
        %v1085 = vpop.f32.mrb[0].mxu0
        %1086 = vmatprep.mubr.bf16.mxu0 0
        %1087 = vmatmul.mubr.bf16.gmra.mrb[0].mxu0 %v1044
        %v1088 = vpop.f32.mrb[0].mxu0
        %v1089 = vadd.f32 %v709, %v1088
        %v1090 = vpop.f32.mrb[0].mxu0
        %v1091 = vpop.f32.mrb[0].mxu0
        %v1092 = vadd.f32 %v709, %v1091
        %v1093 = vpop.f32.mrb[0].mxu0
        %1094 = vdwg.mxu0
        %v1095 = vmax.f32 %v1081, 0.0
        %v1096 = vmax.f32 %v1084, 0.0
        %v1097 = vmax.f32 %v1089, 0.0
        %v1098 = vmax.f32 %v1092, 0.0
        %s1099 = scalar_lea.vmem [#allocation5], 96
        %v1100 = vld [vmem:[%s1099] sm:$0xff]
        %v1101 = vld [vmem:[%s1099 + $0x8] sm:$0xff]
        %v1102 = vld [vmem:[%s1099 + $0x10] sm:$0xff]
        %v1103 = vld [vmem:[%s1099 + $0x18] sm:$0x3f]
        %1105 = vset.pattern.permute.xlu0 0
        %1106 = vperm.xlu0 %1105, %v1100
        %v1107 = vpop.permute.xlu0 %1106
        %1110 = vset.pattern.permute.xlu0 0
        %1111 = vperm.xlu0 %1110, %v1101
        %v1112 = vpop.permute.xlu0 %1111
        %1115 = vset.pattern.permute.xlu0 0
        %1116 = vperm.xlu0 %1115, %v1102
        %v1117 = vpop.permute.xlu0 %1116
        %1120 = vset.pattern.permute.xlu0 0
        %1121 = vperm.xlu0 %1120, %v1103
        %v1122 = vpop.permute.xlu0 %1121
        %v1124 = vmul.f32 %v1095, %v1107
        %v1125 = vmul.f32 %v1096, %v1112
        %v1126 = vmul.f32 %v1097, %v1117
        %v1127 = vmul.f32 %v1098, %v1122
        %v1128 = vpack.c.bf16 %v1125, %v1124
        %v1129 = vpack.c.bf16 %v1127, %v1126
        %v1130 = vld [vmem:[#allocation11] sm:$0xf]
        %v1131 = vld [vmem:[#allocation11 + $0x4] sm:$0xf]
        %v1132 = vld [vmem:[#allocation11 + $0x8] sm:$0xf]
        %v1133 = vld [vmem:[#allocation11 + $0xc] sm:$0xf]
        %v1136 = vunpack.c.l.b16 %v1132
        %v1137 = vunpack.c.l.b16 %v1133
        %v1138 = vpack.c.b16 %v1137, %v1136
        %vm1140 = vcmask 130048
        %v1142 = vsel %vm1140, %v918, 0
        %v1145 = vsel %vm1140, %v919, 0
        %1147 = vmatprep.subr.bf16.mxu0 0
        %1148 = vmatpush1.bf16.msra.mxu0 %v1138
        %1149 = vmatprep.subr.bf16.mxu0 0
        %1150 = vmatpush1.bf16.msra.mxu0 0
        %1151 = vmatprep.subr.bf16.mxu0 0
        %1152 = vmatpush1.bf16.msra.mxu0 0
        %1153 = vmatprep.subr.bf16.mxu0 0
        %1154 = vmatpush1.bf16.msra.mxu0 0
        %1155 = vmatprep.subr.bf16.mxu0 0
        %1156 = vmatpush1.bf16.msra.mxu0 0
        %1157 = vmatprep.subr.bf16.mxu0 0
        %1158 = vmatpush1.bf16.msra.mxu0 0
        %1159 = vmatprep.subr.bf16.mxu0 0
        %1160 = vmatpush1.bf16.msra.mxu0 0
        %1161 = vmatprep.subr.bf16.mxu0 0
        %1162 = vmatpush1.bf16.msra.mxu0 0
        %1163 = vmatprep.subr.bf16.mxu0 0
        %1164 = vmatpush1.bf16.msra.mxu0 0
        %1165 = vmatprep.subr.bf16.mxu0 0
        %1166 = vmatpush1.bf16.msra.mxu0 0
        %1167 = vmatprep.subr.bf16.mxu0 0
        %1168 = vmatpush1.bf16.msra.mxu0 0
        %1169 = vmatprep.subr.bf16.mxu0 0
        %1170 = vmatpush1.bf16.msra.mxu0 0
        %1171 = vmatprep.subr.bf16.mxu0 0
        %1172 = vmatpush1.bf16.msra.mxu0 0
        %1173 = vmatprep.subr.bf16.mxu0 0
        %1174 = vmatpush1.bf16.msra.mxu0 0
        %1175 = vmatprep.subr.bf16.mxu0 0
        %1176 = vmatpush1.bf16.msra.mxu0 0
        %1177 = vmatprep.subr.bf16.mxu0 0
        %1178 = vmatpush1.bf16.msra.mxu0 0
        %1179 = vmatprep.mubr.bf16.mxu0 0
        %1180 = vmatmul.mubr.bf16.gmra.mrb[0].mxu0 %v1142
        %v1181 = vpop.f32.mrb[0].mxu0
        %v1182 = vadd.f32 0.0, %v1181
        %v1183 = vpop.f32.mrb[0].mxu0
        %v1184 = vpop.f32.mrb[0].mxu0
        %v1185 = vadd.f32 0.0, %v1184
        %v1186 = vpop.f32.mrb[0].mxu0
        %1187 = vmatprep.mubr.bf16.mxu0 0
        %1188 = vmatmul.mubr.bf16.gmra.mrb[0].mxu0 %v1145
        %v1189 = vpop.f32.mrb[0].mxu0
        %v1190 = vadd.f32 0.0, %v1189
        %v1191 = vpop.f32.mrb[0].mxu0
        %v1192 = vpop.f32.mrb[0].mxu0
        %v1193 = vpop.f32.mrb[0].mxu0
        %1194 = vdwg.mxu0
        %v1197 = vunpack.c.l.b16 %v1130
        %v1198 = vunpack.c.l.b16 %v1131
        %v1199 = vpack.c.b16 %v1198, %v1197
        %v1202 = vsel %vm1140, %v813, 0
        %v1205 = vsel %vm1140, %v814, 0
        %1207 = vmatprep.subr.bf16.mxu0 0
        %1208 = vmatpush1.bf16.msra.mxu0 %v1199
        %1209 = vmatprep.subr.bf16.mxu0 0
        %1210 = vmatpush1.bf16.msra.mxu0 0
        %1211 = vmatprep.subr.bf16.mxu0 0
        %1212 = vmatpush1.bf16.msra.mxu0 0
        %1213 = vmatprep.subr.bf16.mxu0 0
        %1214 = vmatpush1.bf16.msra.mxu0 0
        %1215 = vmatprep.subr.bf16.mxu0 0
        %1216 = vmatpush1.bf16.msra.mxu0 0
        %1217 = vmatprep.subr.bf16.mxu0 0
        %1218 = vmatpush1.bf16.msra.mxu0 0
        %1219 = vmatprep.subr.bf16.mxu0 0
        %1220 = vmatpush1.bf16.msra.mxu0 0
        %1221 = vmatprep.subr.bf16.mxu0 0
        %1222 = vmatpush1.bf16.msra.mxu0 0
        %1223 = vmatprep.subr.bf16.mxu0 0
        %1224 = vmatpush1.bf16.msra.mxu0 0
        %1225 = vmatprep.subr.bf16.mxu0 0
        %1226 = vmatpush1.bf16.msra.mxu0 0
        %1227 = vmatprep.subr.bf16.mxu0 0
        %1228 = vmatpush1.bf16.msra.mxu0 0
        %1229 = vmatprep.subr.bf16.mxu0 0
        %1230 = vmatpush1.bf16.msra.mxu0 0
        %1231 = vmatprep.subr.bf16.mxu0 0
        %1232 = vmatpush1.bf16.msra.mxu0 0
        %1233 = vmatprep.subr.bf16.mxu0 0
        %1234 = vmatpush1.bf16.msra.mxu0 0
        %1235 = vmatprep.subr.bf16.mxu0 0
        %1236 = vmatpush1.bf16.msra.mxu0 0
        %1237 = vmatprep.subr.bf16.mxu0 0
        %1238 = vmatpush1.bf16.msra.mxu0 0
        %1239 = vmatprep.mubr.bf16.mxu0 0
        %1240 = vmatmul.mubr.bf16.gmra.mrb[0].mxu0 %v1202
        %v1241 = vpop.f32.mrb[0].mxu0
        %v1242 = vadd.f32 %v1182, %v1241
        %v1243 = vpop.f32.mrb[0].mxu0
        %v1244 = vpop.f32.mrb[0].mxu0
        %v1245 = vadd.f32 %v1185, %v1244
        %v1246 = vpop.f32.mrb[0].mxu0
        %1247 = vmatprep.mubr.bf16.mxu0 0
        %1248 = vmatmul.mubr.bf16.gmra.mrb[0].mxu0 %v1205
        %v1249 = vpop.f32.mrb[0].mxu0
        %v1250 = vadd.f32 %v1190, %v1249
        %v1251 = vpop.f32.mrb[0].mxu0
        %v1252 = vpop.f32.mrb[0].mxu0
        %v1253 = vpop.f32.mrb[0].mxu0
        %1254 = vdwg.mxu0
        %v1255 = vld [vmem:[#allocation11 + $0x10] sm:$0xf]
        %v1256 = vld [vmem:[#allocation11 + $0x14] sm:$0xf]
        %vm1257 = vsmask.f32 7424
        %v1258 = vshrl.u32 %v813, 16
        %v1260 = vshll.u32 %v813, 16
        %v1262 = vrot.slane %v1260, 1
        %v1263 = vor.u32 %v1258, %v1262
        %v1264 = vshll.u32 %v814, 16
        %v1266 = vrot.slane %v1264, 1
        %v1267 = vsel %vm1257, %v1263, %v1266
        %v1268 = vshrl.u32 %v814, 16
        %v1270 = vor.u32 %v1268, %v1266
        %v1273 = vunpack.c.l.b16 %v1255
        %v1274 = vunpack.c.l.b16 %v1256
        %v1275 = vpack.c.b16 %v1274, %v1273
        %v1278 = vsel %vm1140, %v1267, 0
        %v1281 = vsel %vm1140, %v1270, 0
        %1283 = vmatprep.subr.bf16.mxu0 0
        %1284 = vmatpush1.bf16.msra.mxu0 %v1275
        %1285 = vmatprep.subr.bf16.mxu0 0
        %1286 = vmatpush1.bf16.msra.mxu0 0
        %1287 = vmatprep.subr.bf16.mxu0 0
        %1288 = vmatpush1.bf16.msra.mxu0 0
        %1289 = vmatprep.subr.bf16.mxu0 0
        %1290 = vmatpush1.bf16.msra.mxu0 0
        %1291 = vmatprep.subr.bf16.mxu0 0
        %1292 = vmatpush1.bf16.msra.mxu0 0
        %1293 = vmatprep.subr.bf16.mxu0 0
        %1294 = vmatpush1.bf16.msra.mxu0 0
        %1295 = vmatprep.subr.bf16.mxu0 0
        %1296 = vmatpush1.bf16.msra.mxu0 0
        %1297 = vmatprep.subr.bf16.mxu0 0
        %1298 = vmatpush1.bf16.msra.mxu0 0
        %1299 = vmatprep.subr.bf16.mxu0 0
        %1300 = vmatpush1.bf16.msra.mxu0 0
        %1301 = vmatprep.subr.bf16.mxu0 0
        %1302 = vmatpush1.bf16.msra.mxu0 0
        %1303 = vmatprep.subr.bf16.mxu0 0
        %1304 = vmatpush1.bf16.msra.mxu0 0
        %1305 = vmatprep.subr.bf16.mxu0 0
        %1306 = vmatpush1.bf16.msra.mxu0 0
        %1307 = vmatprep.subr.bf16.mxu0 0
        %1308 = vmatpush1.bf16.msra.mxu0 0
        %1309 = vmatprep.subr.bf16.mxu0 0
        %1310 = vmatpush1.bf16.msra.mxu0 0
        %1311 = vmatprep.subr.bf16.mxu0 0
        %1312 = vmatpush1.bf16.msra.mxu0 0
        %1313 = vmatprep.subr.bf16.mxu0 0
        %1314 = vmatpush1.bf16.msra.mxu0 0
        %1315 = vmatprep.mubr.bf16.mxu0 0
        %1316 = vmatmul.mubr.bf16.gmra.mrb[0].mxu0 %v1278
        %v1317 = vpop.f32.mrb[0].mxu0
        %v1318 = vadd.f32 0.0, %v1317
        %v1319 = vpop.f32.mrb[0].mxu0
        %v1320 = vpop.f32.mrb[0].mxu0
        %v1321 = vadd.f32 0.0, %v1320
        %v1322 = vpop.f32.mrb[0].mxu0
        %1323 = vmatprep.mubr.bf16.mxu0 0
        %1324 = vmatmul.mubr.bf16.gmra.mrb[0].mxu0 %v1281
        %v1325 = vpop.f32.mrb[0].mxu0
        %v1326 = vadd.f32 0.0, %v1325
        %v1327 = vpop.f32.mrb[0].mxu0
        %v1328 = vpop.f32.mrb[0].mxu0
        %v1329 = vpop.f32.mrb[0].mxu0
        %1330 = vdwg.mxu0
        %v1331 = vadd.f32 %v1242, %v1318
        %v1332 = vadd.f32 %v1245, %v1321
        %v1333 = vadd.f32 %v1250, %v1326
        %v1334 = vld [vmem:[#allocation11 + $0x18] sm:$0xf]
        %v1335 = vld [vmem:[#allocation11 + $0x1c] sm:$0xf]
        %v1338 = vunpack.c.l.b16 %v1334
        %v1339 = vunpack.c.l.b16 %v1335
        %v1340 = vpack.c.b16 %v1339, %v1338
        %v1343 = vsel %vm1140, %v1023, 0
        %v1346 = vsel %vm1140, %v1024, 0
        %1348 = vmatprep.subr.bf16.mxu0 0
        %1349 = vmatpush1.bf16.msra.mxu0 %v1340
        %1350 = vmatprep.subr.bf16.mxu0 0
        %1351 = vmatpush1.bf16.msra.mxu0 0
        %1352 = vmatprep.subr.bf16.mxu0 0
        %1353 = vmatpush1.bf16.msra.mxu0 0
        %1354 = vmatprep.subr.bf16.mxu0 0
        %1355 = vmatpush1.bf16.msra.mxu0 0
        %1356 = vmatprep.subr.bf16.mxu0 0
        %1357 = vmatpush1.bf16.msra.mxu0 0
        %1358 = vmatprep.subr.bf16.mxu0 0
        %1359 = vmatpush1.bf16.msra.mxu0 0
        %1360 = vmatprep.subr.bf16.mxu0 0
        %1361 = vmatpush1.bf16.msra.mxu0 0
        %1362 = vmatprep.subr.bf16.mxu0 0
        %1363 = vmatpush1.bf16.msra.mxu0 0
        %1364 = vmatprep.subr.bf16.mxu0 0
        %1365 = vmatpush1.bf16.msra.mxu0 0
        %1366 = vmatprep.subr.bf16.mxu0 0
        %1367 = vmatpush1.bf16.msra.mxu0 0
        %1368 = vmatprep.subr.bf16.mxu0 0
        %1369 = vmatpush1.bf16.msra.mxu0 0
        %1370 = vmatprep.subr.bf16.mxu0 0
        %1371 = vmatpush1.bf16.msra.mxu0 0
        %1372 = vmatprep.subr.bf16.mxu0 0
        %1373 = vmatpush1.bf16.msra.mxu0 0
        %1374 = vmatprep.subr.bf16.mxu0 0
        %1375 = vmatpush1.bf16.msra.mxu0 0
        %1376 = vmatprep.subr.bf16.mxu0 0
        %1377 = vmatpush1.bf16.msra.mxu0 0
        %1378 = vmatprep.subr.bf16.mxu0 0
        %1379 = vmatpush1.bf16.msra.mxu0 0
        %1380 = vmatprep.mubr.bf16.mxu0 0
        %1381 = vmatmul.mubr.bf16.gmra.mrb[0].mxu0 %v1343
        %v1382 = vpop.f32.mrb[0].mxu0
        %v1383 = vadd.f32 0.0, %v1382
        %v1384 = vpop.f32.mrb[0].mxu0
        %v1385 = vpop.f32.mrb[0].mxu0
        %v1386 = vadd.f32 0.0, %v1385
        %v1387 = vpop.f32.mrb[0].mxu0
        %1388 = vmatprep.mubr.bf16.mxu0 0
        %1389 = vmatmul.mubr.bf16.gmra.mrb[0].mxu0 %v1346
        %v1390 = vpop.f32.mrb[0].mxu0
        %v1391 = vadd.f32 0.0, %v1390
        %v1392 = vpop.f32.mrb[0].mxu0
        %v1393 = vpop.f32.mrb[0].mxu0
        %v1394 = vpop.f32.mrb[0].mxu0
        %1395 = vdwg.mxu0
        %v1396 = vadd.f32 %v1331, %v1383
        %v1397 = vadd.f32 %v1332, %v1386
        %v1398 = vadd.f32 %v1333, %v1391
        %v1399 = vld [vmem:[#allocation11 + $0x20] sm:$0xf]
        %v1400 = vld [vmem:[#allocation11 + $0x24] sm:$0xf]
        %v1403 = vunpack.c.l.b16 %v1399
        %v1404 = vunpack.c.l.b16 %v1400
        %v1405 = vpack.c.b16 %v1404, %v1403
        %v1408 = vsel %vm1140, %v1128, 0
        %v1411 = vsel %vm1140, %v1129, 0
        %1413 = vmatprep.subr.bf16.mxu0 0
        %1414 = vmatpush1.bf16.msra.mxu0 %v1405
        %1415 = vmatprep.subr.bf16.mxu0 0
        %1416 = vmatpush1.bf16.msra.mxu0 0
        %1417 = vmatprep.subr.bf16.mxu0 0
        %1418 = vmatpush1.bf16.msra.mxu0 0
        %1419 = vmatprep.subr.bf16.mxu0 0
        %1420 = vmatpush1.bf16.msra.mxu0 0
        %1421 = vmatprep.subr.bf16.mxu0 0
        %1422 = vmatpush1.bf16.msra.mxu0 0
        %1423 = vmatprep.subr.bf16.mxu0 0
        %1424 = vmatpush1.bf16.msra.mxu0 0
        %1425 = vmatprep.subr.bf16.mxu0 0
        %1426 = vmatpush1.bf16.msra.mxu0 0
        %1427 = vmatprep.subr.bf16.mxu0 0
        %1428 = vmatpush1.bf16.msra.mxu0 0
        %1429 = vmatprep.subr.bf16.mxu0 0
        %1430 = vmatpush1.bf16.msra.mxu0 0
        %1431 = vmatprep.subr.bf16.mxu0 0
        %1432 = vmatpush1.bf16.msra.mxu0 0
        %1433 = vmatprep.subr.bf16.mxu0 0
        %1434 = vmatpush1.bf16.msra.mxu0 0
        %1435 = vmatprep.subr.bf16.mxu0 0
        %1436 = vmatpush1.bf16.msra.mxu0 0
        %1437 = vmatprep.subr.bf16.mxu0 0
        %1438 = vmatpush1.bf16.msra.mxu0 0
        %1439 = vmatprep.subr.bf16.mxu0 0
        %1440 = vmatpush1.bf16.msra.mxu0 0
        %1441 = vmatprep.subr.bf16.mxu0 0
        %1442 = vmatpush1.bf16.msra.mxu0 0
        %1443 = vmatprep.subr.bf16.mxu0 0
        %1444 = vmatpush1.bf16.msra.mxu0 0
        %1445 = vmatprep.mubr.bf16.mxu0 0
        %1446 = vmatmul.mubr.bf16.gmra.mrb[0].mxu0 %v1408
        %v1447 = vpop.f32.mrb[0].mxu0
        %v1448 = vadd.f32 0.0, %v1447
        %v1449 = vpop.f32.mrb[0].mxu0
        %v1450 = vpop.f32.mrb[0].mxu0
        %v1451 = vadd.f32 0.0, %v1450
        %v1452 = vpop.f32.mrb[0].mxu0
        %1453 = vmatprep.mubr.bf16.mxu0 0
        %1454 = vmatmul.mubr.bf16.gmra.mrb[0].mxu0 %v1411
        %v1455 = vpop.f32.mrb[0].mxu0
        %v1456 = vadd.f32 0.0, %v1455
        %v1457 = vpop.f32.mrb[0].mxu0
        %v1458 = vpop.f32.mrb[0].mxu0
        %v1459 = vpop.f32.mrb[0].mxu0
        %1460 = vdwg.mxu0
        %v1461 = vadd.f32 %v1396, %v1448
        %v1462 = vadd.f32 %v1397, %v1451
        %v1463 = vadd.f32 %v1398, %v1456
        %v1464 = vld [vmem:[#allocation11 + $0x28] sm:$0xf]
        %v1465 = vld [vmem:[#allocation11 + $0x2c] sm:$0xf]
        %v1466 = vshrl.u32 %v1023, 16
        %v1468 = vshll.u32 %v1023, 16
        %v1470 = vrot.slane %v1468, 1
        %v1471 = vor.u32 %v1466, %v1470
        %v1472 = vshll.u32 %v1024, 16
        %v1474 = vrot.slane %v1472, 1
        %v1475 = vsel %vm1257, %v1471, %v1474
        %v1476 = vshrl.u32 %v1024, 16
        %v1478 = vor.u32 %v1476, %v1474
        %v1481 = vunpack.c.l.b16 %v1464
        %v1482 = vunpack.c.l.b16 %v1465
        %v1483 = vpack.c.b16 %v1482, %v1481
        %v1486 = vsel %vm1140, %v1475, 0
        %v1489 = vsel %vm1140, %v1478, 0
        %1491 = vmatprep.subr.bf16.mxu0 0
        %1492 = vmatpush1.bf16.msra.mxu0 %v1483
        %1493 = vmatprep.subr.bf16.mxu0 0
        %1494 = vmatpush1.bf16.msra.mxu0 0
        %1495 = vmatprep.subr.bf16.mxu0 0
        %1496 = vmatpush1.bf16.msra.mxu0 0
        %1497 = vmatprep.subr.bf16.mxu0 0
        %1498 = vmatpush1.bf16.msra.mxu0 0
        %1499 = vmatprep.subr.bf16.mxu0 0
        %1500 = vmatpush1.bf16.msra.mxu0 0
        %1501 = vmatprep.subr.bf16.mxu0 0
        %1502 = vmatpush1.bf16.msra.mxu0 0
        %1503 = vmatprep.subr.bf16.mxu0 0
        %1504 = vmatpush1.bf16.msra.mxu0 0
        %1505 = vmatprep.subr.bf16.mxu0 0
        %1506 = vmatpush1.bf16.msra.mxu0 0
        %1507 = vmatprep.subr.bf16.mxu0 0
        %1508 = vmatpush1.bf16.msra.mxu0 0
        %1509 = vmatprep.subr.bf16.mxu0 0
        %1510 = vmatpush1.bf16.msra.mxu0 0
        %1511 = vmatprep.subr.bf16.mxu0 0
        %1512 = vmatpush1.bf16.msra.mxu0 0
        %1513 = vmatprep.subr.bf16.mxu0 0
        %1514 = vmatpush1.bf16.msra.mxu0 0
        %1515 = vmatprep.subr.bf16.mxu0 0
        %1516 = vmatpush1.bf16.msra.mxu0 0
        %1517 = vmatprep.subr.bf16.mxu0 0
        %1518 = vmatpush1.bf16.msra.mxu0 0
        %1519 = vmatprep.subr.bf16.mxu0 0
        %1520 = vmatpush1.bf16.msra.mxu0 0
        %1521 = vmatprep.subr.bf16.mxu0 0
        %1522 = vmatpush1.bf16.msra.mxu0 0
        %1523 = vmatprep.mubr.bf16.mxu0 0
        %1524 = vmatmul.mubr.bf16.gmra.mrb[0].mxu0 %v1486
        %v1525 = vpop.f32.mrb[0].mxu0
        %v1526 = vadd.f32 0.0, %v1525
        %v1527 = vpop.f32.mrb[0].mxu0
        %v1528 = vpop.f32.mrb[0].mxu0
        %v1529 = vadd.f32 0.0, %v1528
        %v1530 = vpop.f32.mrb[0].mxu0
        %1531 = vmatprep.mubr.bf16.mxu0 0
        %1532 = vmatmul.mubr.bf16.gmra.mrb[0].mxu0 %v1489
        %v1533 = vpop.f32.mrb[0].mxu0
        %v1534 = vadd.f32 0.0, %v1533
        %v1535 = vpop.f32.mrb[0].mxu0
        %v1536 = vpop.f32.mrb[0].mxu0
        %v1537 = vpop.f32.mrb[0].mxu0
        %1538 = vdwg.mxu0
        %v1539 = vadd.f32 %v1461, %v1526
        %v1540 = vadd.f32 %v1462, %v1529
        %v1541 = vadd.f32 %v1463, %v1534
        %v1542 = vld [vmem:[#allocation11 + $0x30] sm:$0xf]
        %v1543 = vld [vmem:[#allocation11 + $0x34] sm:$0xf]
        %vm1544 = vsmask.f32 5376
        %v1545 = vrot.slane %v1258, 2
        %v1546 = vrot.slane %v1260, 3
        %v1547 = vor.u32 %v1545, %v1546
        %v1548 = vrot.slane %v1268, 2
        %v1549 = vrot.slane %v1264, 3
        %v1550 = vor.u32 %v1548, %v1549
        %v1551 = vsel %vm1544, %v1547, %v1550
        %v1554 = vunpack.c.l.b16 %v1542
        %v1555 = vunpack.c.l.b16 %v1543
        %v1556 = vpack.c.b16 %v1555, %v1554
        %v1559 = vsel %vm1140, %v1551, 0
        %v1562 = vsel %vm1140, %v1550, 0
        %1564 = vmatprep.subr.bf16.mxu0 0
        %1565 = vmatpush1.bf16.msra.mxu0 %v1556
        %1566 = vmatprep.subr.bf16.mxu0 0
        %1567 = vmatpush1.bf16.msra.mxu0 0
        %1568 = vmatprep.subr.bf16.mxu0 0
        %1569 = vmatpush1.bf16.msra.mxu0 0
        %1570 = vmatprep.subr.bf16.mxu0 0
        %1571 = vmatpush1.bf16.msra.mxu0 0
        %1572 = vmatprep.subr.bf16.mxu0 0
        %1573 = vmatpush1.bf16.msra.mxu0 0
        %1574 = vmatprep.subr.bf16.mxu0 0
        %1575 = vmatpush1.bf16.msra.mxu0 0
        %1576 = vmatprep.subr.bf16.mxu0 0
        %1577 = vmatpush1.bf16.msra.mxu0 0
        %1578 = vmatprep.subr.bf16.mxu0 0
        %1579 = vmatpush1.bf16.msra.mxu0 0
        %1580 = vmatprep.subr.bf16.mxu0 0
        %1581 = vmatpush1.bf16.msra.mxu0 0
        %1582 = vmatprep.subr.bf16.mxu0 0
        %1583 = vmatpush1.bf16.msra.mxu0 0
        %1584 = vmatprep.subr.bf16.mxu0 0
        %1585 = vmatpush1.bf16.msra.mxu0 0
        %1586 = vmatprep.subr.bf16.mxu0 0
        %1587 = vmatpush1.bf16.msra.mxu0 0
        %1588 = vmatprep.subr.bf16.mxu0 0
        %1589 = vmatpush1.bf16.msra.mxu0 0
        %1590 = vmatprep.subr.bf16.mxu0 0
        %1591 = vmatpush1.bf16.msra.mxu0 0
        %1592 = vmatprep.subr.bf16.mxu0 0
        %1593 = vmatpush1.bf16.msra.mxu0 0
        %1594 = vmatprep.subr.bf16.mxu0 0
        %1595 = vmatpush1.bf16.msra.mxu0 0
        %1596 = vmatprep.mubr.bf16.mxu0 0
        %1597 = vmatmul.mubr.bf16.gmra.mrb[0].mxu0 %v1559
        %v1598 = vpop.f32.mrb[0].mxu0
        %v1599 = vadd.f32 0.0, %v1598
        %v1600 = vpop.f32.mrb[0].mxu0
        %v1601 = vpop.f32.mrb[0].mxu0
        %v1602 = vadd.f32 0.0, %v1601
        %v1603 = vpop.f32.mrb[0].mxu0
        %1604 = vmatprep.mubr.bf16.mxu0 0
        %1605 = vmatmul.mubr.bf16.gmra.mrb[0].mxu0 %v1562
        %v1606 = vpop.f32.mrb[0].mxu0
        %v1607 = vadd.f32 0.0, %v1606
        %v1608 = vpop.f32.mrb[0].mxu0
        %v1609 = vpop.f32.mrb[0].mxu0
        %v1610 = vpop.f32.mrb[0].mxu0
        %1611 = vdwg.mxu0
        %v1612 = vadd.f32 %v1539, %v1599
        %v1613 = vadd.f32 %v1540, %v1602
        %v1614 = vadd.f32 %v1541, %v1607
        %v1615 = vld [vmem:[#allocation11 + $0x38] sm:$0xf]
        %v1616 = vld [vmem:[#allocation11 + $0x3c] sm:$0xf]
        %v1617 = vshrl.u32 %v918, 16
        %v1619 = vrot.slane %v1617, 2
        %v1620 = vshll.u32 %v918, 16
        %v1622 = vrot.slane %v1620, 3
        %v1623 = vor.u32 %v1619, %v1622
        %v1624 = vshrl.u32 %v919, 16
        %v1626 = vrot.slane %v1624, 2
        %v1627 = vshll.u32 %v919, 16
        %v1629 = vrot.slane %v1627, 3
        %v1630 = vor.u32 %v1626, %v1629
        %v1631 = vsel %vm1544, %v1623, %v1630
        %v1634 = vunpack.c.l.b16 %v1615
        %v1635 = vunpack.c.l.b16 %v1616
        %v1636 = vpack.c.b16 %v1635, %v1634
        %v1639 = vsel %vm1140, %v1631, 0
        %v1642 = vsel %vm1140, %v1630, 0
        %1644 = vmatprep.subr.bf16.mxu0 0
        %1645 = vmatpush1.bf16.msra.mxu0 %v1636
        %1646 = vmatprep.subr.bf16.mxu0 0
        %1647 = vmatpush1.bf16.msra.mxu0 0
        %1648 = vmatprep.subr.bf16.mxu0 0
        %1649 = vmatpush1.bf16.msra.mxu0 0
        %1650 = vmatprep.subr.bf16.mxu0 0
        %1651 = vmatpush1.bf16.msra.mxu0 0
        %1652 = vmatprep.subr.bf16.mxu0 0
        %1653 = vmatpush1.bf16.msra.mxu0 0
        %1654 = vmatprep.subr.bf16.mxu0 0
        %1655 = vmatpush1.bf16.msra.mxu0 0
        %1656 = vmatprep.subr.bf16.mxu0 0
        %1657 = vmatpush1.bf16.msra.mxu0 0
        %1658 = vmatprep.subr.bf16.mxu0 0
        %1659 = vmatpush1.bf16.msra.mxu0 0
        %1660 = vmatprep.subr.bf16.mxu0 0
        %1661 = vmatpush1.bf16.msra.mxu0 0
        %1662 = vmatprep.subr.bf16.mxu0 0
        %1663 = vmatpush1.bf16.msra.mxu0 0
        %1664 = vmatprep.subr.bf16.mxu0 0
        %1665 = vmatpush1.bf16.msra.mxu0 0
        %1666 = vmatprep.subr.bf16.mxu0 0
        %1667 = vmatpush1.bf16.msra.mxu0 0
        %1668 = vmatprep.subr.bf16.mxu0 0
        %1669 = vmatpush1.bf16.msra.mxu0 0
        %1670 = vmatprep.subr.bf16.mxu0 0
        %1671 = vmatpush1.bf16.msra.mxu0 0
        %1672 = vmatprep.subr.bf16.mxu0 0
        %1673 = vmatpush1.bf16.msra.mxu0 0
        %1674 = vmatprep.subr.bf16.mxu0 0
        %1675 = vmatpush1.bf16.msra.mxu0 0
        %1676 = vmatprep.mubr.bf16.mxu0 0
        %1677 = vmatmul.mubr.bf16.gmra.mrb[0].mxu0 %v1639
        %v1678 = vpop.f32.mrb[0].mxu0
        %v1679 = vadd.f32 0.0, %v1678
        %v1680 = vpop.f32.mrb[0].mxu0
        %v1681 = vpop.f32.mrb[0].mxu0
        %v1682 = vadd.f32 0.0, %v1681
        %v1683 = vpop.f32.mrb[0].mxu0
        %1684 = vmatprep.mubr.bf16.mxu0 0
        %1685 = vmatmul.mubr.bf16.gmra.mrb[0].mxu0 %v1642
        %v1686 = vpop.f32.mrb[0].mxu0
        %v1687 = vadd.f32 0.0, %v1686
        %v1688 = vpop.f32.mrb[0].mxu0
        %v1689 = vpop.f32.mrb[0].mxu0
        %v1690 = vpop.f32.mrb[0].mxu0
        %1691 = vdwg.mxu0
        %v1692 = vadd.f32 %v1612, %v1679
        %v1693 = vadd.f32 %v1613, %v1682
        %v1694 = vadd.f32 %v1614, %v1687
        %v1695 = vld [vmem:[#allocation11 + $0x40] sm:$0xf]
        %v1696 = vld [vmem:[#allocation11 + $0x44] sm:$0xf]
        %vm1699 = vcmask 1044480
        %v1700 = vrot.slane %v813, 3
        %v1701 = vrot.slane %v814, 3
        %v1702 = vsel %vm1699, %v1700, %v1701
        %v1705 = vunpack.c.l.b16 %v1695
        %v1706 = vunpack.c.l.b16 %v1696
        %v1707 = vpack.c.b16 %v1706, %v1705
        %v1710 = vsel %vm1140, %v1702, 0
        %v1713 = vsel %vm1140, %v1701, 0
        %1715 = vmatprep.subr.bf16.mxu0 0
        %1716 = vmatpush1.bf16.msra.mxu0 %v1707
        %1717 = vmatprep.subr.bf16.mxu0 0
        %1718 = vmatpush1.bf16.msra.mxu0 0
        %1719 = vmatprep.subr.bf16.mxu0 0
        %1720 = vmatpush1.bf16.msra.mxu0 0
        %1721 = vmatprep.subr.bf16.mxu0 0
        %1722 = vmatpush1.bf16.msra.mxu0 0
        %1723 = vmatprep.subr.bf16.mxu0 0
        %1724 = vmatpush1.bf16.msra.mxu0 0
        %1725 = vmatprep.subr.bf16.mxu0 0
        %1726 = vmatpush1.bf16.msra.mxu0 0
        %1727 = vmatprep.subr.bf16.mxu0 0
        %1728 = vmatpush1.bf16.msra.mxu0 0
        %1729 = vmatprep.subr.bf16.mxu0 0
        %1730 = vmatpush1.bf16.msra.mxu0 0
        %1731 = vmatprep.subr.bf16.mxu0 0
        %1732 = vmatpush1.bf16.msra.mxu0 0
        %1733 = vmatprep.subr.bf16.mxu0 0
        %1734 = vmatpush1.bf16.msra.mxu0 0
        %1735 = vmatprep.subr.bf16.mxu0 0
        %1736 = vmatpush1.bf16.msra.mxu0 0
        %1737 = vmatprep.subr.bf16.mxu0 0
        %1738 = vmatpush1.bf16.msra.mxu0 0
        %1739 = vmatprep.subr.bf16.mxu0 0
        %1740 = vmatpush1.bf16.msra.mxu0 0
        %1741 = vmatprep.subr.bf16.mxu0 0
        %1742 = vmatpush1.bf16.msra.mxu0 0
        %1743 = vmatprep.subr.bf16.mxu0 0
        %1744 = vmatpush1.bf16.msra.mxu0 0
        %1745 = vmatprep.subr.bf16.mxu0 0
        %1746 = vmatpush1.bf16.msra.mxu0 0
        %1747 = vmatprep.mubr.bf16.mxu0 0
        %1748 = vmatmul.mubr.bf16.gmra.mrb[0].mxu0 %v1710
        %v1749 = vpop.f32.mrb[0].mxu0
        %v1750 = vadd.f32 0.0, %v1749
        %v1751 = vpop.f32.mrb[0].mxu0
        %v1752 = vpop.f32.mrb[0].mxu0
        %v1753 = vadd.f32 0.0, %v1752
        %v1754 = vpop.f32.mrb[0].mxu0
        %1755 = vmatprep.mubr.bf16.mxu0 0
        %1756 = vmatmul.mubr.bf16.gmra.mrb[0].mxu0 %v1713
        %v1757 = vpop.f32.mrb[0].mxu0
        %v1758 = vadd.f32 0.0, %v1757
        %v1759 = vpop.f32.mrb[0].mxu0
        %v1760 = vpop.f32.mrb[0].mxu0
        %v1761 = vpop.f32.mrb[0].mxu0
        %1762 = vdwg.mxu0
        %v1763 = vadd.f32 %v1692, %v1750
        %v1764 = vadd.f32 %v1693, %v1753
        %v1765 = vadd.f32 %v1694, %v1758
        %v1766 = vld [vmem:[#allocation13] sm:$0x1]
        %v1768 = vlaneseq
        %v1769 = vshrl.u32 %v1768, 7
        %v1770 = vsub.s32 0, %v1769
        %v1771 = vrot.slane %v1766, %v1770
        %v1773 = vadd.f32 %v1763, %v1771
        %v1774 = vadd.f32 %v1764, %v1771
        %v1775 = vadd.f32 %v1765, %v1771
        %v1776 = vmax.f32 %v1773, 0.0
        %v1777 = vmax.f32 %v1774, 0.0
        %v1778 = vmax.f32 %v1775, 0.0
        %v1779 = vld [vmem:[#allocation7] sm:$0xff]
        %v1780 = vld [vmem:[#allocation7 + $0x8] sm:$0xff]
        %v1781 = vld [vmem:[#allocation7 + $0x10] sm:$0xf]
        %1783 = vset.pattern.permute.xlu0 0
        %1784 = vperm.xlu0 %1783, %v1779
        %v1785 = vpop.permute.xlu0 %1784
        %1788 = vset.pattern.permute.xlu0 0
        %1789 = vperm.xlu0 %1788, %v1780
        %v1790 = vpop.permute.xlu0 %1789
        %1793 = vset.pattern.permute.xlu0 0
        %1794 = vperm.xlu0 %1793, %v1781
        %v1795 = vpop.permute.xlu0 %1794
        %v1797 = vmul.f32 %v1776, %v1785
        %v1798 = vmul.f32 %v1777, %v1790
        %v1799 = vmul.f32 %v1778, %v1795
        %v1800 = vsel %vm1140, %v1797, 0.0
        %v1801 = vsel %vm1140, %v1798, 0.0
        %v1802 = vadd.f32 %v1800, %v1801
        %vm1803 = vcmask 125952
        %v1804 = vsel %vm1803, %v1799, 0.0
        %v1805 = vadd.f32 %v1802, %v1804
        %v1806 = vrot.slane %v1805, 4
        %v1807 = vadd.f32 %v1805, %v1806
        %v1808 = vrot.slane %v1807, 2
        %v1809 = vadd.f32 %v1807, %v1808
        %v1810 = vrot.slane %v1809, 1
        %v1811 = vadd.f32 %v1809, %v1810
        %v1812 = vmul.f32 %v1811, 0.0625
        %v1813 = vpack.c.bf16 %v1812, %v1812
        %v1814 = vld [vmem:[#allocation14] sm:$0xf]
        %v1815 = vld [vmem:[#allocation14 + $0x4] sm:$0xf]
        %v1816 = vld [vmem:[#allocation16] sm:$0x1]
        %v1819 = vunpack.c.l.b16 %v1814
        %v1820 = vunpack.c.l.b16 %v1815
        %v1821 = vpack.c.b16 %v1820, %v1819
        %v1824 = vsel %vm1140, %v1813, 0
        %1826 = vmatprep.subr.bf16.mxu0 0
        %1827 = vmatpush1.bf16.msra.mxu0 %v1821
        %1828 = vmatprep.subr.bf16.mxu0 0
        %1829 = vmatpush1.bf16.msra.mxu0 0
        %1830 = vmatprep.subr.bf16.mxu0 0
        %1831 = vmatpush1.bf16.msra.mxu0 0
        %1832 = vmatprep.subr.bf16.mxu0 0
        %1833 = vmatpush1.bf16.msra.mxu0 0
        %1834 = vmatprep.subr.bf16.mxu0 0
        %1835 = vmatpush1.bf16.msra.mxu0 0
        %1836 = vmatprep.subr.bf16.mxu0 0
        %1837 = vmatpush1.bf16.msra.mxu0 0
        %1838 = vmatprep.subr.bf16.mxu0 0
        %1839 = vmatpush1.bf16.msra.mxu0 0
        %1840 = vmatprep.subr.bf16.mxu0 0
        %1841 = vmatpush1.bf16.msra.mxu0 0
        %1842 = vmatprep.subr.bf16.mxu0 0
        %1843 = vmatpush1.bf16.msra.mxu0 0
        %1844 = vmatprep.subr.bf16.mxu0 0
        %1845 = vmatpush1.bf16.msra.mxu0 0
        %1846 = vmatprep.subr.bf16.mxu0 0
        %1847 = vmatpush1.bf16.msra.mxu0 0
        %1848 = vmatprep.subr.bf16.mxu0 0
        %1849 = vmatpush1.bf16.msra.mxu0 0
        %1850 = vmatprep.subr.bf16.mxu0 0
        %1851 = vmatpush1.bf16.msra.mxu0 0
        %1852 = vmatprep.subr.bf16.mxu0 0
        %1853 = vmatpush1.bf16.msra.mxu0 0
        %1854 = vmatprep.subr.bf16.mxu0 0
        %1855 = vmatpush1.bf16.msra.mxu0 0
        %1856 = vmatprep.subr.bf16.mxu0 0
        %1857 = vmatpush1.bf16.msra.mxu0 0
        %1858 = vmatprep.mubr.bf16.mxu0 0
        %1859 = vmatmul.mubr.bf16.gmra.mrb[0].mxu0 %v1824
        %v1860 = vpop.f32.mrb[0].mxu0
        %v1861 = vadd.f32 %v1816, %v1860
        %v1862 = vpop.f32.mrb[0].mxu0
        %v1863 = vpop.f32.mrb[0].mxu0
        %v1864 = vpop.f32.mrb[0].mxu0
        %1865 = vdwg.mxu0
        %v1866 = vmax.f32 %v1861, 0.0
        %v1867 = vpack.c.bf16 %v1866, %v1866
        %v1868 = vld [vmem:[#allocation17] sm:$0x1]
        %v1869 = vld [vmem:[#allocation19] sm:$0x1]
        %vm1870 = vcmask 15360
        %v1872 = vsel %vm1870, %v1867, 0
        %vm1874 = vcmask 1040384
        %v1876 = vsel %vm1874, %v1868, 0
        %1878 = vmatprep.subr.bf16.mxu0 0
        %1879 = vmatpush1.bf16.msra.mxu0 %v1876
        %1880 = vmatprep.subr.bf16.mxu0 0
        %1881 = vmatpush1.bf16.msra.mxu0 0
        %1882 = vmatprep.subr.bf16.mxu0 0
        %1883 = vmatpush1.bf16.msra.mxu0 0
        %1884 = vmatprep.subr.bf16.mxu0 0
        %1885 = vmatpush1.bf16.msra.mxu0 0
        %1886 = vmatprep.subr.bf16.mxu0 0
        %1887 = vmatpush1.bf16.msra.mxu0 0
        %1888 = vmatprep.subr.bf16.mxu0 0
        %1889 = vmatpush1.bf16.msra.mxu0 0
        %1890 = vmatprep.subr.bf16.mxu0 0
        %1891 = vmatpush1.bf16.msra.mxu0 0
        %1892 = vmatprep.subr.bf16.mxu0 0
        %1893 = vmatpush1.bf16.msra.mxu0 0
        %1894 = vmatprep.subr.bf16.mxu0 0
        %1895 = vmatpush1.bf16.msra.mxu0 0
        %1896 = vmatprep.subr.bf16.mxu0 0
        %1897 = vmatpush1.bf16.msra.mxu0 0
        %1898 = vmatprep.subr.bf16.mxu0 0
        %1899 = vmatpush1.bf16.msra.mxu0 0
        %1900 = vmatprep.subr.bf16.mxu0 0
        %1901 = vmatpush1.bf16.msra.mxu0 0
        %1902 = vmatprep.subr.bf16.mxu0 0
        %1903 = vmatpush1.bf16.msra.mxu0 0
        %1904 = vmatprep.subr.bf16.mxu0 0
        %1905 = vmatpush1.bf16.msra.mxu0 0
        %1906 = vmatprep.subr.bf16.mxu0 0
        %1907 = vmatpush1.bf16.msra.mxu0 0
        %1908 = vmatprep.subr.bf16.mxu0 0
        %1909 = vmatpush1.bf16.msra.mxu0 0
        %1910 = vmatprep.mubr.bf16.mxu0 0
        %1911 = vmatmul.mubr.bf16.gmra.mrb[0].mxu0 %v1872
        %v1912 = vpop.f32.mrb[0].mxu0
        %v1913 = vadd.f32 %v1869, %v1912
        %v1914 = vpop.f32.mrb[0].mxu0
        %v1915 = vpop.f32.mrb[0].mxu0
        %v1916 = vpop.f32.mrb[0].mxu0
        %1917 = vdwg.mxu0
        %v1918 = vxor.u32 %v1913, 2147483648
        %v1919 = vmul.f32 %v1918, 1.442695
        %v1920 = vpow.pop %v1919
        %v1921 = vadd.f32 %v1920, 1.0
        %v1922 = vrcp.pop %v1921
        %v1923 = vmul.f32 1.0, %v1922
        %v1924 = vlaneseq
        %v1925 = vshrl.u32 %v1924, 7
        %v1926 = vsub.s32 0, %v1925
        %v1927 = vrot.slane %v1923, %v1926
        %v1928 = vmul.f32 %v1776, %v1927
        %v1929 = vmul.f32 %v1777, %v1927
        %v1930 = vmul.f32 %v1778, %v1927
        %v1931 = vpack.c.bf16 %v1929, %v1928
        %v1932 = vpack.c.bf16 %v1930, %v1930
        %v1933 = vld [vmem:[#allocation20] sm:$0xf]
        %v1934 = vld [vmem:[#allocation20 + $0x4] sm:$0xf]
        %v1935 = vld [vmem:[#allocation22] sm:$0x1]
        %v1937 = vlaneseq
        %v1938 = vshrl.u32 %v1937, 7
        %v1939 = vsub.s32 0, %v1938
        %v1940 = vrot.slane %v1935, %v1939
        %v1944 = vunpack.c.l.b16 %v1933
        %v1945 = vunpack.c.l.b16 %v1934
        %v1946 = vpack.c.b16 %v1945, %v1944
        %v1949 = vsel %vm1140, %v1931, 0
        %v1952 = vsel %vm1140, %v1932, 0
        %1954 = vmatprep.subr.bf16.mxu0 0
        %1955 = vmatpush1.bf16.msra.mxu0 %v1946
        %1956 = vmatprep.subr.bf16.mxu0 0
        %1957 = vmatpush1.bf16.msra.mxu0 0
        %1958 = vmatprep.subr.bf16.mxu0 0
        %1959 = vmatpush1.bf16.msra.mxu0 0
        %1960 = vmatprep.subr.bf16.mxu0 0
        %1961 = vmatpush1.bf16.msra.mxu0 0
        %1962 = vmatprep.subr.bf16.mxu0 0
        %1963 = vmatpush1.bf16.msra.mxu0 0
        %1964 = vmatprep.subr.bf16.mxu0 0
        %1965 = vmatpush1.bf16.msra.mxu0 0
        %1966 = vmatprep.subr.bf16.mxu0 0
        %1967 = vmatpush1.bf16.msra.mxu0 0
        %1968 = vmatprep.subr.bf16.mxu0 0
        %1969 = vmatpush1.bf16.msra.mxu0 0
        %1970 = vmatprep.subr.bf16.mxu0 0
        %1971 = vmatpush1.bf16.msra.mxu0 0
        %1972 = vmatprep.subr.bf16.mxu0 0
        %1973 = vmatpush1.bf16.msra.mxu0 0
        %1974 = vmatprep.subr.bf16.mxu0 0
        %1975 = vmatpush1.bf16.msra.mxu0 0
        %1976 = vmatprep.subr.bf16.mxu0 0
        %1977 = vmatpush1.bf16.msra.mxu0 0
        %1978 = vmatprep.subr.bf16.mxu0 0
        %1979 = vmatpush1.bf16.msra.mxu0 0
        %1980 = vmatprep.subr.bf16.mxu0 0
        %1981 = vmatpush1.bf16.msra.mxu0 0
        %1982 = vmatprep.subr.bf16.mxu0 0
        %1983 = vmatpush1.bf16.msra.mxu0 0
        %1984 = vmatprep.subr.bf16.mxu0 0
        %1985 = vmatpush1.bf16.msra.mxu0 0
        %1986 = vmatprep.mubr.bf16.mxu0 0
        %1987 = vmatmul.mubr.bf16.gmra.mrb[0].mxu0 %v1949
        %v1988 = vpop.f32.mrb[0].mxu0
        %v1989 = vadd.f32 %v1940, %v1988
        %v1990 = vpop.f32.mrb[0].mxu0
        %v1991 = vpop.f32.mrb[0].mxu0
        %v1992 = vadd.f32 %v1940, %v1991
        %v1993 = vpop.f32.mrb[0].mxu0
        %1994 = vmatprep.mubr.bf16.mxu0 0
        %1995 = vmatmul.mubr.bf16.gmra.mrb[0].mxu0 %v1952
        %v1996 = vpop.f32.mrb[0].mxu0
        %v1997 = vadd.f32 %v1940, %v1996
        %v1998 = vpop.f32.mrb[0].mxu0
        %v1999 = vpop.f32.mrb[0].mxu0
        %v2000 = vpop.f32.mrb[0].mxu0
        %2001 = vdwg.mxu0
        %v2002 = vld [vmem:[%s1025] sm:$0xf]
        %v2003 = vld [vmem:[%s1025 + $0x4] sm:$0xf]
        %v2004 = vld [vmem:[%s1025 + $0x8] sm:$0x3]
        %v2005 = vld [vmem:[#allocation23] sm:$0xf]
        %v2006 = vld [vmem:[#allocation25] sm:$0x1]
        %v2008 = vlaneseq
        %v2009 = vshrl.u32 %v2008, 7
        %v2010 = vsub.s32 0, %v2009
        %v2011 = vrot.slane %v2006, %v2010
        %v2016 = vunpack.c.l.b16 %v2002
        %v2017 = vunpack.c.l.b16 %v2003
        %v2018 = vunpack.c.l.b16 %v2004
        %v2019 = vpack.c.b16 %v2017, %v2016
        %v2020 = vpack.c.b16 %v2018, %v2018
        %v2022 = vsel %vm721, %v2019, 0
        %v2025 = vsel %vm721, %v2020, 0
        %v2028 = vsel %vm728, %v2005, 0
        %2030 = vmatprep.subr.bf16.mxu0 0
        %2031 = vmatpush1.bf16.msra.mxu0 %v2028
        %2032 = vmatprep.subr.bf16.mxu0 0
        %2033 = vmatpush1.bf16.msra.mxu0 0
        %2034 = vmatprep.subr.bf16.mxu0 0
        %2035 = vmatpush1.bf16.msra.mxu0 0
        %2036 = vmatprep.subr.bf16.mxu0 0
        %2037 = vmatpush1.bf16.msra.mxu0 0
        %2038 = vmatprep.subr.bf16.mxu0 0
        %2039 = vmatpush1.bf16.msra.mxu0 0
        %2040 = vmatprep.subr.bf16.mxu0 0
        %2041 = vmatpush1.bf16.msra.mxu0 0
        %2042 = vmatprep.subr.bf16.mxu0 0
        %2043 = vmatpush1.bf16.msra.mxu0 0
        %2044 = vmatprep.subr.bf16.mxu0 0
        %2045 = vmatpush1.bf16.msra.mxu0 0
        %2046 = vmatprep.subr.bf16.mxu0 0
        %2047 = vmatpush1.bf16.msra.mxu0 0
        %2048 = vmatprep.subr.bf16.mxu0 0
        %2049 = vmatpush1.bf16.msra.mxu0 0
        %2050 = vmatprep.subr.bf16.mxu0 0
        %2051 = vmatpush1.bf16.msra.mxu0 0
        %2052 = vmatprep.subr.bf16.mxu0 0
        %2053 = vmatpush1.bf16.msra.mxu0 0
        %2054 = vmatprep.subr.bf16.mxu0 0
        %2055 = vmatpush1.bf16.msra.mxu0 0
        %2056 = vmatprep.subr.bf16.mxu0 0
        %2057 = vmatpush1.bf16.msra.mxu0 0
        %2058 = vmatprep.subr.bf16.mxu0 0
        %2059 = vmatpush1.bf16.msra.mxu0 0
        %2060 = vmatprep.subr.bf16.mxu0 0
        %2061 = vmatpush1.bf16.msra.mxu0 0
        %2062 = vmatprep.mubr.bf16.mxu0 0
        %2063 = vmatmul.mubr.bf16.gmra.mrb[0].mxu0 %v2022
        %v2064 = vpop.f32.mrb[0].mxu0
        %v2065 = vadd.f32 %v2011, %v2064
        %v2066 = vpop.f32.mrb[0].mxu0
        %v2067 = vpop.f32.mrb[0].mxu0
        %v2068 = vadd.f32 %v2011, %v2067
        %v2069 = vpop.f32.mrb[0].mxu0
        %2070 = vmatprep.mubr.bf16.mxu0 0
        %2071 = vmatmul.mubr.bf16.gmra.mrb[0].mxu0 %v2025
        %v2072 = vpop.f32.mrb[0].mxu0
        %v2073 = vadd.f32 %v2011, %v2072
        %v2074 = vpop.f32.mrb[0].mxu0
        %v2075 = vpop.f32.mrb[0].mxu0
        %v2076 = vpop.f32.mrb[0].mxu0
        %2077 = vdwg.mxu0
        %v2078 = vadd.f32 %v1989, %v2065
        %v2079 = vadd.f32 %v1992, %v2068
        %v2080 = vadd.f32 %v1997, %v2073
        %v2081 = vmax.f32 %v2078, 0.0
        %v2082 = vmax.f32 %v2079, 0.0
        %v2083 = vmax.f32 %v2080, 0.0
        %2084 = vst.msk [vmem:[%s697] sm:$0xff] %vm1140, %v2081
        %2085 = vst.msk [vmem:[%s697 + $0x8] sm:$0xff] %vm1140, %v2082
        %2086 = vst.msk [vmem:[%s697 + $0x10] sm:$0xf] %vm1803, %v2083
        %s2087 = sand.u32 %s367, 1
        %s2088 = scalar_lea.sflag [#allocation4], %s2087
        %s2089 = sand.u32 %s367, 1
        %s2090 = smul.addr %s2089, 24
        %s2091 = scalar_lea.vmem [#allocation26], %s2090
        // Predicated region
        $region141: #{res_bottleneck_block_pallas.1} parent=79 // pred_check
          %p2092 = pneg %p377
        $region142: #{res_bottleneck_block_pallas.1} parent=79 // pred_check_branch
          %2094 = sbr.rel (%p2092) target = $region144
        $region143: #{res_bottleneck_block_pallas.1} parent=79 // pred_region
          %s2096 = ssub.s32 384, 384
          %2097 = vsyncadd %s2088, %s2096
          %s2098 = smul.addr %s39, 3
          %s2099 = smul.addr %s2098, 128
          %s2100 = scalar_lea.hbm %s15, %s2099
          %s2101 = sshll.u32 %s2091, 4
          %s2102 = int_to_ptr.vmem [resolvable:$true] %s2101
          %2107 = dma.vmem_to_hbm [thread:$0]  %s2102, 384, %s2100, %s2088, 128, 128, 8
        $region144: #{res_bottleneck_block_pallas.1} parent=79 // pred_fallthru
          _
      $region80: #{res_bottleneck_block_pallas.1} parent=5 // pred_fallthru
        _
      %p2108 = scmp.le.s32.totalorder 2, %s34
      // Predicated region
      $region145: #{res_bottleneck_block_pallas.1} parent=5 // pred_check
        %p2109 = pneg %p2108
      $region146: #{res_bottleneck_block_pallas.1} parent=5 // pred_check_branch
        %2111 = sbr.rel (%p2109) target = $region148
      $region147: #{res_bottleneck_block_pallas.1} parent=5 // pred_region
        %s2112 = ssub.s32 %s34, 2
        // Predicated region
        $region149: #{res_bottleneck_block_pallas.1} parent=147 // pred_check
          %p2113 = pneg %p383
        $region150: #{res_bottleneck_block_pallas.1} parent=147 // pred_check_branch
          %2115 = sbr.rel (%p2113) target = $region152
        $region151: #{res_bottleneck_block_pallas.1} parent=147 // pred_region
          %s2116 = sand.u32 %s368, 1
          %s2117 = scalar_lea.sflag [#allocation4], %s2116
          %s2118 = sand.u32 %s368, 1
          %s2119 = smul.addr %s2118, 24
          %s2120 = scalar_lea.vmem [#allocation26], %s2119
          %2121 = dma.done %s2117, 384
        $region152: #{res_bottleneck_block_pallas.1} parent=147 // pred_fallthru
          _
      $region148: #{res_bottleneck_block_pallas.1} parent=5 // pred_fallthru
        _
    $region6: #{res_bottleneck_block_pallas.1} parent=1 // loop_footer
      %s38 = sadd.s32 1, %s34
    $region7: #{res_bottleneck_block_pallas.1} parent=1 // loop_footer_branch
      %33 = sbr.rel target = $region3
    $region8: #{res_bottleneck_block_pallas.1} parent=1 // loop_exit
      _
    %2122 = vsyncpa [#allocation3], 1
    %s2123 = scalar_lea.sflag [#allocation3], 1
    %2124 = vsyncpa %s2123, 1
    %2125 = vsyncpa [#allocation6], 1
    %2126 = vsyncpa [#allocation9], 1
    %2127 = vsyncpa [#allocation12], 1
    %2128 = vsyncpa [#allocation15], 1
    %2129 = vsyncpa [#allocation18], 1
    %2130 = vsyncpa [#allocation21], 1
    %2131 = vsyncpa [#allocation24], 1
    %2132 = vsyncpa [#allocation4], 1
    %s2133 = scalar_lea.sflag [#allocation4], 1
    %2134 = vsyncpa %s2133, 1

</llo_original>
